<compile_context>
chip_gen: v6e
topology: v6e:2x2x1
jax: 0.10.0
libtpu: 0.0.40
codegen_flags: <defaults>
</compile_context>

<pallas_src>
import functools

import jax
import jax.numpy as jnp
from jax import lax
from jax.experimental import pallas as pl
from jax.experimental.pallas import tpu as pltpu

_EPS = 1e-5


def _block_kernel(x_ref, w1_ref, w2_ref, m1_ref, m2_ref,
                  o_ref, h1_ref, p1_ref, p2_ref, *, H, W):
    """Fused Conv3x3 -> BN -> ReLU -> Conv3x3 -> BN -> ReLU.

    Layout: channels on sublanes, flattened H*W spatial grid on lanes.
    """
    N, Cin, HW = x_ref.shape
    Mid = w1_ref.shape[0]
    Cout = w2_ref.shape[0]
    Ho1, Wo1 = H - 2, W - 2
    Ho2, Wo2 = H - 4, W - 4

    mask1 = m1_ref[...]          # (1, HW), 1.0 where conv1 output is valid
    mask2 = m2_ref[...]          # (1, HW), 1.0 where conv2 output is valid
    w1 = w1_ref[...]             # (Mid, 9*Cin)
    w2 = w2_ref[...]             # (Cout, 9*Mid)

    def shifted(v, off):
        # shifted[:, p] = v[:, (p + off) % HW]; wrap-around only ever lands on
        # positions that are masked out of the stats and cropped afterwards.
        return v if off == 0 else pltpu.roll(v, HW - off, axis=1)

    def conv_full(v, w_r, p_ref, C):
        # im2col: 9 XLU lane-rolls build the (9*C, HW) patch matrix, then one
        # MXU matmul with K = 9*C (instead of nine shallow K=C matmuls).
        for t in range(9):
            ky, kx = t // 3, t % 3
            p_ref[pl.ds(t * C, C), :] = shifted(v, ky * W + kx)
        return jnp.dot(w_r, p_ref[...], preferred_element_type=jnp.float32)

    # ---- conv1 + one-pass masked BN1 statistics (staged in h1_ref) ---------
    s1 = jnp.zeros((Mid, 1), jnp.float32)
    q1 = jnp.zeros((Mid, 1), jnp.float32)
    for n in range(N):                       # N is small & static -> unrolled
        h = conv_full(x_ref[n], w1, p1_ref, Cin)             # (Mid, HW)
        hm = h * mask1
        s1 = s1 + jnp.sum(hm, axis=1, keepdims=True)
        q1 = q1 + jnp.sum(hm * hm, axis=1, keepdims=True)
        h1_ref[n] = h
    inv1 = 1.0 / float(N * Ho1 * Wo1)
    mean1 = s1 * inv1
    var1 = q1 * inv1 - mean1 * mean1         # biased batch variance
    scale1 = lax.rsqrt(var1 + _EPS)

    # ---- BN1 + ReLU -> conv2 + one-pass masked BN2 stats (staged in o_ref) -
    s2 = jnp.zeros((Cout, 1), jnp.float32)
    q2 = jnp.zeros((Cout, 1), jnp.float32)
    for n in range(N):
        y1 = jnp.maximum((h1_ref[n] - mean1) * scale1, 0.0)  # (Mid, HW)
        h = conv_full(y1, w2, p2_ref, Mid)                   # (Cout, HW)
        hm = h * mask2
        s2 = s2 + jnp.sum(hm, axis=1, keepdims=True)
        q2 = q2 + jnp.sum(hm * hm, axis=1, keepdims=True)
        o_ref[n] = h
    inv2 = 1.0 / float(N * Ho2 * Wo2)
    mean2 = s2 * inv2
    var2 = q2 * inv2 - mean2 * mean2
    scale2 = lax.rsqrt(var2 + _EPS)

    # ---- BN2 + ReLU; zero the (to-be-cropped) halo so the output is clean --
    for n in range(N):
        o_ref[n] = jnp.maximum((o_ref[n] - mean2) * scale2, 0.0) * mask2


@jax.jit
def block_forward(x_nchw, w1, w2):
    """Block forward for PyTorch-layout inputs: x (N,Cin,H,W), w (Cout,Cin,3,3)."""
    N, Cin, H, W = x_nchw.shape
    Mid = w1.shape[0]
    Cout = w2.shape[0]
    HW = H * W
    Ho1, Wo1 = H - 2, W - 2
    Ho2, Wo2 = H - 4, W - 4

    # Free row-major reshape -- the kernel consumes NCHW directly.
    x_flat = x_nchw.reshape(N, Cin, HW).astype(jnp.float32)
    # (Cout, Cin, 3, 3) -> (Cout, 9*Cin) with k = (ky*3+kx)*Cin + ci, matching
    # the in-kernel patch ordering.  Conv biases are omitted: they are exactly
    # cancelled by the following training-mode BN mean subtraction.
    w1r = jnp.transpose(w1, (0, 2, 3, 1)).reshape(Mid, 9 * Cin).astype(jnp.float32)
    w2r = jnp.transpose(w2, (0, 2, 3, 1)).reshape(Cout, 9 * Mid).astype(jnp.float32)

    # Validity masks on the flattened HxW grid (constant-folded under jit).
    yy = jnp.arange(H, dtype=jnp.int32).reshape(H, 1)
    xx = jnp.arange(W, dtype=jnp.int32).reshape(1, W)
    mask1 = ((yy < Ho1) & (xx < Wo1)).astype(jnp.float32).reshape(1, HW)
    mask2 = ((yy < Ho2) & (xx < Wo2)).astype(jnp.float32).reshape(1, HW)

    kernel = functools.partial(_block_kernel, H=H, W=W)
    out_full = pl.pallas_call(
        kernel,
        out_shape=jax.ShapeDtypeStruct((N, Cout, HW), jnp.float32),
        grid_spec=pltpu.PrefetchScalarGridSpec(
            num_scalar_prefetch=0,
            grid=(1,),
            in_specs=[
                pl.BlockSpec((N, Cin, HW), lambda i: (0, 0, 0)),
                pl.BlockSpec((Mid, 9 * Cin), lambda i: (0, 0)),
                pl.BlockSpec((Cout, 9 * Mid), lambda i: (0, 0)),
                pl.BlockSpec((1, HW), lambda i: (0, 0)),
                pl.BlockSpec((1, HW), lambda i: (0, 0)),
            ],
            out_specs=pl.BlockSpec((N, Cout, HW), lambda i: (0, 0, 0)),
            scratch_shapes=[
                pltpu.VMEM((N, Mid, HW), jnp.float32),    # conv1 activations
                pltpu.VMEM((9 * Cin, HW), jnp.float32),   # conv1 im2col patches
                pltpu.VMEM((9 * Mid, HW), jnp.float32),   # conv2 im2col patches
            ],
        ),
        compiler_params=pltpu.CompilerParams(
            dimension_semantics=("arbitrary",)),
    )(x_flat, w1r, w2r, mask1, mask2)

    # Free reshape back to the H x W grid + cheap crop of the 2-pixel halo.
    return out_full.reshape(N, Cout, H, W)[:, :, :Ho2, :Wo2]


# ----------------------------------------------------------------------------
# Parameter init (xavier_uniform on conv weights, like the module; BN gamma=1,
# beta=0 per module init -> affine is identity and is fused away).
# ----------------------------------------------------------------------------
def xavier_uniform_conv(key, cin, cout):
    fan_in, fan_out = cin * 9, cout * 9
    limit = (6.0 / (fan_in + fan_out)) ** 0.5
    return jax.random.uniform(key, (cout, cin, 3, 3), jnp.float32,
                              minval=-limit, maxval=limit)


# ----------------------------------------------------------------------------
# Pure-JAX reference (same math) for a correctness check.
# ----------------------------------------------------------------------------
def _ref_forward(x_nchw, w1, w2):
    def conv(v, w):
        return lax.conv_general_dilated(
            v, w, window_strides=(1, 1), padding="VALID",
            dimension_numbers=("NCHW", "OIHW", "NCHW"))

    def bnrelu(v):
        mean = jnp.mean(v, axis=(0, 2, 3), keepdims=True)
        var = jnp.mean((v - mean) ** 2, axis=(0, 2, 3), keepdims=True)
        return jnp.maximum((v - mean) * lax.rsqrt(var + _EPS), 0.0)

    return bnrelu(conv(bnrelu(conv(x_nchw, w1)), w2))


if __name__ == "__main__":
    key = jax.random.PRNGKey(0)
    kx, k1, k2 = jax.random.split(key, 3)

    in_channels, out_channels = 4, 8             # mid_channels defaults to out
    x = jax.random.normal(kx, (2, in_channels, 16, 16), jnp.float32)   # NCHW
    w1 = xavier_uniform_conv(k1, in_channels, out_channels)
    w2 = xavier_uniform_conv(k2, out_channels, out_channels)

    out = jax.block_until_ready(block_forward(x, w1, w2))
    ref = _ref_forward(x, w1, w2)

    assert out.shape == (2, out_channels, 12, 12), out.shape
    assert jnp.allclose(out, ref, atol=1e-4, rtol=1e-4), "mismatch vs reference"

    print("KERNEL_OK")
</pallas_src>

<mosaic_0001>
module attributes {stable_mosaic.version = 11 : i64} {
  func.func @_block_kernel(%arg0: i32, %arg1: memref<2x4x256xf32, #tpu.memory_space<vmem>>, %arg2: memref<8x36xf32, #tpu.memory_space<vmem>>, %arg3: memref<8x72xf32, #tpu.memory_space<vmem>>, %arg4: memref<1x256xf32, #tpu.memory_space<vmem>>, %arg5: memref<1x256xf32, #tpu.memory_space<vmem>>, %arg6: memref<2x8x256xf32, #tpu.memory_space<vmem>>, %arg7: memref<2x8x256xf32, #tpu.memory_space<vmem>>, %arg8: memref<36x256xf32, #tpu.memory_space<vmem>>, %arg9: memref<72x256xf32, #tpu.memory_space<vmem>>) attributes {dimension_semantics = [#tpu.dimension_semantics<arbitrary>], iteration_bounds = array<i64: 1>, scalar_prefetch = 0 : i64, scratch_operands = 3 : i64, tpu.core_type = #tpu.core_type<tc>, window_params = [{pipeline_mode = #tpu.pipeline_mode<synchronous>, transform_indices = @transform_0, window_bounds = array<i64: 2, 4, 256>}, {pipeline_mode = #tpu.pipeline_mode<synchronous>, transform_indices = @transform_1, window_bounds = array<i64: 8, 36>}, {pipeline_mode = #tpu.pipeline_mode<synchronous>, transform_indices = @transform_2, window_bounds = array<i64: 8, 72>}, {pipeline_mode = #tpu.pipeline_mode<synchronous>, transform_indices = @transform_3, window_bounds = array<i64: 1, 256>}, {pipeline_mode = #tpu.pipeline_mode<synchronous>, transform_indices = @transform_4, window_bounds = array<i64: 1, 256>}, {pipeline_mode = #tpu.pipeline_mode<synchronous>, transform_indices = @transform_5, window_bounds = array<i64: 2, 8, 256>}]} {
    %c0 = arith.constant 0 : index
    %c0_0 = arith.constant 0 : index
    %0 = vector.load %arg4[%c0, %c0_0] : memref<1x256xf32, #tpu.memory_space<vmem>>, vector<1x256xf32>
    %c0_1 = arith.constant 0 : index
    %c0_2 = arith.constant 0 : index
    %1 = vector.load %arg5[%c0_1, %c0_2] : memref<1x256xf32, #tpu.memory_space<vmem>>, vector<1x256xf32>
    %c0_3 = arith.constant 0 : index
    %c0_4 = arith.constant 0 : index
    %2 = vector.load %arg2[%c0_3, %c0_4] : memref<8x36xf32, #tpu.memory_space<vmem>>, vector<8x36xf32>
    %c0_5 = arith.constant 0 : index
    %c0_6 = arith.constant 0 : index
    %3 = vector.load %arg3[%c0_5, %c0_6] : memref<8x72xf32, #tpu.memory_space<vmem>>, vector<8x72xf32>
    %cst = arith.constant 0.000000e+00 : f32
    %4 = vector.broadcast %cst : f32 to vector<8x1xf32>
    %cst_7 = arith.constant 0.000000e+00 : f32
    %5 = vector.broadcast %cst_7 : f32 to vector<8x1xf32>
    %c0_8 = arith.constant 0 : index
    %c0_9 = arith.constant 0 : index
    %c0_10 = arith.constant 0 : index
    %6 = vector.load %arg1[%c0_8, %c0_9, %c0_10] : memref<2x4x256xf32, #tpu.memory_space<vmem>>, vector<1x4x256xf32>
    %7 = vector.shape_cast %6 : vector<1x4x256xf32> to vector<4x256xf32>
    %c0_11 = arith.constant 0 : index
    %c0_12 = arith.constant 0 : index
    %8 = vector.load %arg8[%c0_11, %c0_12] : memref<36x256xf32, #tpu.memory_space<vmem>>, vector<4x256xf32>
    tpu.vector_store %arg8[%c0_11, %c0_12], %7 {strides = array<i32>} : memref<36x256xf32, #tpu.memory_space<vmem>>, vector<4x256xf32>,
    %c255_i32 = arith.constant 255 : i32
    %9 = tpu.dynamic_rotate %7 by %c255_i32 dim 1 : vector<4x256xf32>, i32 -> vector<4x256xf32>
    %c4 = arith.constant 4 : index
    %c0_13 = arith.constant 0 : index
    %10 = vector.load %arg8[%c4, %c0_13] : memref<36x256xf32, #tpu.memory_space<vmem>>, vector<4x256xf32>
    tpu.vector_store %arg8[%c4, %c0_13], %9 {strides = array<i32>} : memref<36x256xf32, #tpu.memory_space<vmem>>, vector<4x256xf32>,
    %c254_i32 = arith.constant 254 : i32
    %11 = tpu.dynamic_rotate %7 by %c254_i32 dim 1 : vector<4x256xf32>, i32 -> vector<4x256xf32>
    %c8 = arith.constant 8 : index
    %c0_14 = arith.constant 0 : index
    %12 = vector.load %arg8[%c8, %c0_14] : memref<36x256xf32, #tpu.memory_space<vmem>>, vector<4x256xf32>
    tpu.vector_store %arg8[%c8, %c0_14], %11 {strides = array<i32>} : memref<36x256xf32, #tpu.memory_space<vmem>>, vector<4x256xf32>,
    %c240_i32 = arith.constant 240 : i32
    %13 = tpu.dynamic_rotate %7 by %c240_i32 dim 1 : vector<4x256xf32>, i32 -> vector<4x256xf32>
    %c12 = arith.constant 12 : index
    %c0_15 = arith.constant 0 : index
    %14 = vector.load %arg8[%c12, %c0_15] : memref<36x256xf32, #tpu.memory_space<vmem>>, vector<4x256xf32>
    tpu.vector_store %arg8[%c12, %c0_15], %13 {strides = array<i32>} : memref<36x256xf32, #tpu.memory_space<vmem>>, vector<4x256xf32>,
    %c239_i32 = arith.constant 239 : i32
    %15 = tpu.dynamic_rotate %7 by %c239_i32 dim 1 : vector<4x256xf32>, i32 -> vector<4x256xf32>
    %c16 = arith.constant 16 : index
    %c0_16 = arith.constant 0 : index
    %16 = vector.load %arg8[%c16, %c0_16] : memref<36x256xf32, #tpu.memory_space<vmem>>, vector<4x256xf32>
    tpu.vector_store %arg8[%c16, %c0_16], %15 {strides = array<i32>} : memref<36x256xf32, #tpu.memory_space<vmem>>, vector<4x256xf32>,
    %c238_i32 = arith.constant 238 : i32
    %17 = tpu.dynamic_rotate %7 by %c238_i32 dim 1 : vector<4x256xf32>, i32 -> vector<4x256xf32>
    %c20 = arith.constant 20 : index
    %c0_17 = arith.constant 0 : index
    %18 = vector.load %arg8[%c20, %c0_17] : memref<36x256xf32, #tpu.memory_space<vmem>>, vector<4x256xf32>
    tpu.vector_store %arg8[%c20, %c0_17], %17 {strides = array<i32>} : memref<36x256xf32, #tpu.memory_space<vmem>>, vector<4x256xf32>,
    %c224_i32 = arith.constant 224 : i32
    %19 = tpu.dynamic_rotate %7 by %c224_i32 dim 1 : vector<4x256xf32>, i32 -> vector<4x256xf32>
    %c24 = arith.constant 24 : index
    %c0_18 = arith.constant 0 : index
    %20 = vector.load %arg8[%c24, %c0_18] : memref<36x256xf32, #tpu.memory_space<vmem>>, vector<4x256xf32>
    tpu.vector_store %arg8[%c24, %c0_18], %19 {strides = array<i32>} : memref<36x256xf32, #tpu.memory_space<vmem>>, vector<4x256xf32>,
    %c223_i32 = arith.constant 223 : i32
    %21 = tpu.dynamic_rotate %7 by %c223_i32 dim 1 : vector<4x256xf32>, i32 -> vector<4x256xf32>
    %c28 = arith.constant 28 : index
    %c0_19 = arith.constant 0 : index
    %22 = vector.load %arg8[%c28, %c0_19] : memref<36x256xf32, #tpu.memory_space<vmem>>, vector<4x256xf32>
    tpu.vector_store %arg8[%c28, %c0_19], %21 {strides = array<i32>} : memref<36x256xf32, #tpu.memory_space<vmem>>, vector<4x256xf32>,
    %c222_i32 = arith.constant 222 : i32
    %23 = tpu.dynamic_rotate %7 by %c222_i32 dim 1 : vector<4x256xf32>, i32 -> vector<4x256xf32>
    %c32 = arith.constant 32 : index
    %c0_20 = arith.constant 0 : index
    %24 = vector.load %arg8[%c32, %c0_20] : memref<36x256xf32, #tpu.memory_space<vmem>>, vector<4x256xf32>
    tpu.vector_store %arg8[%c32, %c0_20], %23 {strides = array<i32>} : memref<36x256xf32, #tpu.memory_space<vmem>>, vector<4x256xf32>,
    %c0_21 = arith.constant 0 : index
    %c0_22 = arith.constant 0 : index
    %25 = vector.load %arg8[%c0_21, %c0_22] : memref<36x256xf32, #tpu.memory_space<vmem>>, vector<36x256xf32>
    %cst_23 = arith.constant dense<0.000000e+00> : vector<8x256xf32>
    %26 = tpu.matmul %2, %25, %cst_23 {dimension_numbers = #tpu.dot_dimension_numbers<[1], [0], [0], [1], [0, 0, 1, 1], [], []>} : vector<8x36xf32>, vector<36x256xf32>, vector<8x256xf32> -> vector<8x256xf32>
    %27 = vector.broadcast %0 : vector<1x256xf32> to vector<8x256xf32>
    %28 = arith.mulf %26, %27 : vector<8x256xf32>
    %cst_24 = arith.constant dense<0.000000e+00> : vector<8xf32>
    %29 = vector.multi_reduction <add>, %28, %cst_24 [1] : vector<8x256xf32> to vector<8xf32>
    %30 = vector.shape_cast %29 : vector<8xf32> to vector<8x1xf32>
    %31 = arith.addf %4, %30 : vector<8x1xf32>
    %32 = arith.mulf %28, %28 : vector<8x256xf32>
    %cst_25 = arith.constant dense<0.000000e+00> : vector<8xf32>
    %33 = vector.multi_reduction <add>, %32, %cst_25 [1] : vector<8x256xf32> to vector<8xf32>
    %34 = vector.shape_cast %33 : vector<8xf32> to vector<8x1xf32>
    %35 = arith.addf %5, %34 : vector<8x1xf32>
    %c0_26 = arith.constant 0 : index
    %c0_27 = arith.constant 0 : index
    %c0_28 = arith.constant 0 : index
    %36 = vector.load %arg7[%c0_26, %c0_27, %c0_28] : memref<2x8x256xf32, #tpu.memory_space<vmem>>, vector<1x8x256xf32>
    %37 = vector.shape_cast %36 : vector<1x8x256xf32> to vector<8x256xf32>
    %38 = vector.shape_cast %26 : vector<8x256xf32> to vector<1x8x256xf32>
    tpu.vector_store %arg7[%c0_26, %c0_27, %c0_28], %38 {strides = array<i32>} : memref<2x8x256xf32, #tpu.memory_space<vmem>>, vector<1x8x256xf32>,
    %c1 = arith.constant 1 : index
    %c0_29 = arith.constant 0 : index
    %c0_30 = arith.constant 0 : index
    %39 = vector.load %arg1[%c1, %c0_29, %c0_30] : memref<2x4x256xf32, #tpu.memory_space<vmem>>, vector<1x4x256xf32>
    %40 = vector.shape_cast %39 : vector<1x4x256xf32> to vector<4x256xf32>
    %c0_31 = arith.constant 0 : index
    %c0_32 = arith.constant 0 : index
    %41 = vector.load %arg8[%c0_31, %c0_32] : memref<36x256xf32, #tpu.memory_space<vmem>>, vector<4x256xf32>
    tpu.vector_store %arg8[%c0_31, %c0_32], %40 {strides = array<i32>} : memref<36x256xf32, #tpu.memory_space<vmem>>, vector<4x256xf32>,
    %c255_i32_33 = arith.constant 255 : i32
    %42 = tpu.dynamic_rotate %40 by %c255_i32_33 dim 1 : vector<4x256xf32>, i32 -> vector<4x256xf32>
    %c4_34 = arith.constant 4 : index
    %c0_35 = arith.constant 0 : index
    %43 = vector.load %arg8[%c4_34, %c0_35] : memref<36x256xf32, #tpu.memory_space<vmem>>, vector<4x256xf32>
    tpu.vector_store %arg8[%c4_34, %c0_35], %42 {strides = array<i32>} : memref<36x256xf32, #tpu.memory_space<vmem>>, vector<4x256xf32>,
    %c254_i32_36 = arith.constant 254 : i32
    %44 = tpu.dynamic_rotate %40 by %c254_i32_36 dim 1 : vector<4x256xf32>, i32 -> vector<4x256xf32>
    %c8_37 = arith.constant 8 : index
    %c0_38 = arith.constant 0 : index
    %45 = vector.load %arg8[%c8_37, %c0_38] : memref<36x256xf32, #tpu.memory_space<vmem>>, vector<4x256xf32>
    tpu.vector_store %arg8[%c8_37, %c0_38], %44 {strides = array<i32>} : memref<36x256xf32, #tpu.memory_space<vmem>>, vector<4x256xf32>,
    %c240_i32_39 = arith.constant 240 : i32
    %46 = tpu.dynamic_rotate %40 by %c240_i32_39 dim 1 : vector<4x256xf32>, i32 -> vector<4x256xf32>
    %c12_40 = arith.constant 12 : index
    %c0_41 = arith.constant 0 : index
    %47 = vector.load %arg8[%c12_40, %c0_41] : memref<36x256xf32, #tpu.memory_space<vmem>>, vector<4x256xf32>
    tpu.vector_store %arg8[%c12_40, %c0_41], %46 {strides = array<i32>} : memref<36x256xf32, #tpu.memory_space<vmem>>, vector<4x256xf32>,
    %c239_i32_42 = arith.constant 239 : i32
    %48 = tpu.dynamic_rotate %40 by %c239_i32_42 dim 1 : vector<4x256xf32>, i32 -> vector<4x256xf32>
    %c16_43 = arith.constant 16 : index
    %c0_44 = arith.constant 0 : index
    %49 = vector.load %arg8[%c16_43, %c0_44] : memref<36x256xf32, #tpu.memory_space<vmem>>, vector<4x256xf32>
    tpu.vector_store %arg8[%c16_43, %c0_44], %48 {strides = array<i32>} : memref<36x256xf32, #tpu.memory_space<vmem>>, vector<4x256xf32>,
    %c238_i32_45 = arith.constant 238 : i32
    %50 = tpu.dynamic_rotate %40 by %c238_i32_45 dim 1 : vector<4x256xf32>, i32 -> vector<4x256xf32>
    %c20_46 = arith.constant 20 : index
    %c0_47 = arith.constant 0 : index
    %51 = vector.load %arg8[%c20_46, %c0_47] : memref<36x256xf32, #tpu.memory_space<vmem>>, vector<4x256xf32>
    tpu.vector_store %arg8[%c20_46, %c0_47], %50 {strides = array<i32>} : memref<36x256xf32, #tpu.memory_space<vmem>>, vector<4x256xf32>,
    %c224_i32_48 = arith.constant 224 : i32
    %52 = tpu.dynamic_rotate %40 by %c224_i32_48 dim 1 : vector<4x256xf32>, i32 -> vector<4x256xf32>
    %c24_49 = arith.constant 24 : index
    %c0_50 = arith.constant 0 : index
    %53 = vector.load %arg8[%c24_49, %c0_50] : memref<36x256xf32, #tpu.memory_space<vmem>>, vector<4x256xf32>
    tpu.vector_store %arg8[%c24_49, %c0_50], %52 {strides = array<i32>} : memref<36x256xf32, #tpu.memory_space<vmem>>, vector<4x256xf32>,
    %c223_i32_51 = arith.constant 223 : i32
    %54 = tpu.dynamic_rotate %40 by %c223_i32_51 dim 1 : vector<4x256xf32>, i32 -> vector<4x256xf32>
    %c28_52 = arith.constant 28 : index
    %c0_53 = arith.constant 0 : index
    %55 = vector.load %arg8[%c28_52, %c0_53] : memref<36x256xf32, #tpu.memory_space<vmem>>, vector<4x256xf32>
    tpu.vector_store %arg8[%c28_52, %c0_53], %54 {strides = array<i32>} : memref<36x256xf32, #tpu.memory_space<vmem>>, vector<4x256xf32>,
    %c222_i32_54 = arith.constant 222 : i32
    %56 = tpu.dynamic_rotate %40 by %c222_i32_54 dim 1 : vector<4x256xf32>, i32 -> vector<4x256xf32>
    %c32_55 = arith.constant 32 : index
    %c0_56 = arith.constant 0 : index
    %57 = vector.load %arg8[%c32_55, %c0_56] : memref<36x256xf32, #tpu.memory_space<vmem>>, vector<4x256xf32>
    tpu.vector_store %arg8[%c32_55, %c0_56], %56 {strides = array<i32>} : memref<36x256xf32, #tpu.memory_space<vmem>>, vector<4x256xf32>,
    %c0_57 = arith.constant 0 : index
    %c0_58 = arith.constant 0 : index
    %58 = vector.load %arg8[%c0_57, %c0_58] : memref<36x256xf32, #tpu.memory_space<vmem>>, vector<36x256xf32>
    %cst_59 = arith.constant dense<0.000000e+00> : vector<8x256xf32>
    %59 = tpu.matmul %2, %58, %cst_59 {dimension_numbers = #tpu.dot_dimension_numbers<[1], [0], [0], [1], [0, 0, 1, 1], [], []>} : vector<8x36xf32>, vector<36x256xf32>, vector<8x256xf32> -> vector<8x256xf32>
    %60 = vector.broadcast %0 : vector<1x256xf32> to vector<8x256xf32>
    %61 = arith.mulf %59, %60 : vector<8x256xf32>
    %cst_60 = arith.constant dense<0.000000e+00> : vector<8xf32>
    %62 = vector.multi_reduction <add>, %61, %cst_60 [1] : vector<8x256xf32> to vector<8xf32>
    %63 = vector.shape_cast %62 : vector<8xf32> to vector<8x1xf32>
    %64 = arith.addf %31, %63 : vector<8x1xf32>
    %65 = arith.mulf %61, %61 : vector<8x256xf32>
    %cst_61 = arith.constant dense<0.000000e+00> : vector<8xf32>
    %66 = vector.multi_reduction <add>, %65, %cst_61 [1] : vector<8x256xf32> to vector<8xf32>
    %67 = vector.shape_cast %66 : vector<8xf32> to vector<8x1xf32>
    %68 = arith.addf %35, %67 : vector<8x1xf32>
    %c1_62 = arith.constant 1 : index
    %c0_63 = arith.constant 0 : index
    %c0_64 = arith.constant 0 : index
    %69 = vector.load %arg7[%c1_62, %c0_63, %c0_64] : memref<2x8x256xf32, #tpu.memory_space<vmem>>, vector<1x8x256xf32>
    %70 = vector.shape_cast %69 : vector<1x8x256xf32> to vector<8x256xf32>
    %71 = vector.shape_cast %59 : vector<8x256xf32> to vector<1x8x256xf32>
    tpu.vector_store %arg7[%c1_62, %c0_63, %c0_64], %71 {strides = array<i32>} : memref<2x8x256xf32, #tpu.memory_space<vmem>>, vector<1x8x256xf32>,
    %cst_65 = arith.constant 0.00255102036 : f32
    %72 = vector.broadcast %cst_65 : f32 to vector<8x1xf32>
    %73 = arith.mulf %64, %72 : vector<8x1xf32>
    %cst_66 = arith.constant 0.00255102036 : f32
    %74 = vector.broadcast %cst_66 : f32 to vector<8x1xf32>
    %75 = arith.mulf %68, %74 : vector<8x1xf32>
    %76 = arith.mulf %73, %73 : vector<8x1xf32>
    %77 = arith.subf %75, %76 : vector<8x1xf32>
    %cst_67 = arith.constant 9.99999974E-6 : f32
    %78 = vector.broadcast %cst_67 : f32 to vector<8x1xf32>
    %79 = arith.addf %77, %78 : vector<8x1xf32>
    %80 = math.rsqrt %79 : vector<8x1xf32>
    %cst_68 = arith.constant 0.000000e+00 : f32
    %81 = vector.broadcast %cst_68 : f32 to vector<8x1xf32>
    %cst_69 = arith.constant 0.000000e+00 : f32
    %82 = vector.broadcast %cst_69 : f32 to vector<8x1xf32>
    %c0_70 = arith.constant 0 : index
    %c0_71 = arith.constant 0 : index
    %c0_72 = arith.constant 0 : index
    %83 = vector.load %arg7[%c0_70, %c0_71, %c0_72] : memref<2x8x256xf32, #tpu.memory_space<vmem>>, vector<1x8x256xf32>
    %84 = vector.shape_cast %83 : vector<1x8x256xf32> to vector<8x256xf32>
    %85 = vector.broadcast %73 : vector<8x1xf32> to vector<8x256xf32>
    %86 = arith.subf %84, %85 : vector<8x256xf32>
    %87 = vector.broadcast %80 : vector<8x1xf32> to vector<8x256xf32>
    %88 = arith.mulf %86, %87 : vector<8x256xf32>
    %cst_73 = arith.constant 0.000000e+00 : f32
    %89 = vector.broadcast %cst_73 : f32 to vector<8x256xf32>
    %90 = arith.maximumf %88, %89 : vector<8x256xf32>
    %c0_74 = arith.constant 0 : index
    %c0_75 = arith.constant 0 : index
    %91 = vector.load %arg9[%c0_74, %c0_75] : memref<72x256xf32, #tpu.memory_space<vmem>>, vector<8x256xf32>
    tpu.vector_store %arg9[%c0_74, %c0_75], %90 {strides = array<i32>} : memref<72x256xf32, #tpu.memory_space<vmem>>, vector<8x256xf32>,
    %c255_i32_76 = arith.constant 255 : i32
    %92 = tpu.dynamic_rotate %90 by %c255_i32_76 dim 1 : vector<8x256xf32>, i32 -> vector<8x256xf32>
    %c8_77 = arith.constant 8 : index
    %c0_78 = arith.constant 0 : index
    %93 = vector.load %arg9[%c8_77, %c0_78] : memref<72x256xf32, #tpu.memory_space<vmem>>, vector<8x256xf32>
    tpu.vector_store %arg9[%c8_77, %c0_78], %92 {strides = array<i32>} : memref<72x256xf32, #tpu.memory_space<vmem>>, vector<8x256xf32>,
    %c254_i32_79 = arith.constant 254 : i32
    %94 = tpu.dynamic_rotate %90 by %c254_i32_79 dim 1 : vector<8x256xf32>, i32 -> vector<8x256xf32>
    %c16_80 = arith.constant 16 : index
    %c0_81 = arith.constant 0 : index
    %95 = vector.load %arg9[%c16_80, %c0_81] : memref<72x256xf32, #tpu.memory_space<vmem>>, vector<8x256xf32>
    tpu.vector_store %arg9[%c16_80, %c0_81], %94 {strides = array<i32>} : memref<72x256xf32, #tpu.memory_space<vmem>>, vector<8x256xf32>,
    %c240_i32_82 = arith.constant 240 : i32
    %96 = tpu.dynamic_rotate %90 by %c240_i32_82 dim 1 : vector<8x256xf32>, i32 -> vector<8x256xf32>
    %c24_83 = arith.constant 24 : index
    %c0_84 = arith.constant 0 : index
    %97 = vector.load %arg9[%c24_83, %c0_84] : memref<72x256xf32, #tpu.memory_space<vmem>>, vector<8x256xf32>
    tpu.vector_store %arg9[%c24_83, %c0_84], %96 {strides = array<i32>} : memref<72x256xf32, #tpu.memory_space<vmem>>, vector<8x256xf32>,
    %c239_i32_85 = arith.constant 239 : i32
    %98 = tpu.dynamic_rotate %90 by %c239_i32_85 dim 1 : vector<8x256xf32>, i32 -> vector<8x256xf32>
    %c32_86 = arith.constant 32 : index
    %c0_87 = arith.constant 0 : index
    %99 = vector.load %arg9[%c32_86, %c0_87] : memref<72x256xf32, #tpu.memory_space<vmem>>, vector<8x256xf32>
    tpu.vector_store %arg9[%c32_86, %c0_87], %98 {strides = array<i32>} : memref<72x256xf32, #tpu.memory_space<vmem>>, vector<8x256xf32>,
    %c238_i32_88 = arith.constant 238 : i32
    %100 = tpu.dynamic_rotate %90 by %c238_i32_88 dim 1 : vector<8x256xf32>, i32 -> vector<8x256xf32>
    %c40 = arith.constant 40 : index
    %c0_89 = arith.constant 0 : index
    %101 = vector.load %arg9[%c40, %c0_89] : memref<72x256xf32, #tpu.memory_space<vmem>>, vector<8x256xf32>
    tpu.vector_store %arg9[%c40, %c0_89], %100 {strides = array<i32>} : memref<72x256xf32, #tpu.memory_space<vmem>>, vector<8x256xf32>,
    %c224_i32_90 = arith.constant 224 : i32
    %102 = tpu.dynamic_rotate %90 by %c224_i32_90 dim 1 : vector<8x256xf32>, i32 -> vector<8x256xf32>
    %c48 = arith.constant 48 : index
    %c0_91 = arith.constant 0 : index
    %103 = vector.load %arg9[%c48, %c0_91] : memref<72x256xf32, #tpu.memory_space<vmem>>, vector<8x256xf32>
    tpu.vector_store %arg9[%c48, %c0_91], %102 {strides = array<i32>} : memref<72x256xf32, #tpu.memory_space<vmem>>, vector<8x256xf32>,
    %c223_i32_92 = arith.constant 223 : i32
    %104 = tpu.dynamic_rotate %90 by %c223_i32_92 dim 1 : vector<8x256xf32>, i32 -> vector<8x256xf32>
    %c56 = arith.constant 56 : index
    %c0_93 = arith.constant 0 : index
    %105 = vector.load %arg9[%c56, %c0_93] : memref<72x256xf32, #tpu.memory_space<vmem>>, vector<8x256xf32>
    tpu.vector_store %arg9[%c56, %c0_93], %104 {strides = array<i32>} : memref<72x256xf32, #tpu.memory_space<vmem>>, vector<8x256xf32>,
    %c222_i32_94 = arith.constant 222 : i32
    %106 = tpu.dynamic_rotate %90 by %c222_i32_94 dim 1 : vector<8x256xf32>, i32 -> vector<8x256xf32>
    %c64 = arith.constant 64 : index
    %c0_95 = arith.constant 0 : index
    %107 = vector.load %arg9[%c64, %c0_95] : memref<72x256xf32, #tpu.memory_space<vmem>>, vector<8x256xf32>
    tpu.vector_store %arg9[%c64, %c0_95], %106 {strides = array<i32>} : memref<72x256xf32, #tpu.memory_space<vmem>>, vector<8x256xf32>,
    %c0_96 = arith.constant 0 : index
    %c0_97 = arith.constant 0 : index
    %108 = vector.load %arg9[%c0_96, %c0_97] : memref<72x256xf32, #tpu.memory_space<vmem>>, vector<72x256xf32>
    %cst_98 = arith.constant dense<0.000000e+00> : vector<8x256xf32>
    %109 = tpu.matmul %3, %108, %cst_98 {dimension_numbers = #tpu.dot_dimension_numbers<[1], [0], [0], [1], [0, 0, 1, 1], [], []>} : vector<8x72xf32>, vector<72x256xf32>, vector<8x256xf32> -> vector<8x256xf32>
    %110 = vector.broadcast %1 : vector<1x256xf32> to vector<8x256xf32>
    %111 = arith.mulf %109, %110 : vector<8x256xf32>
    %cst_99 = arith.constant dense<0.000000e+00> : vector<8xf32>
    %112 = vector.multi_reduction <add>, %111, %cst_99 [1] : vector<8x256xf32> to vector<8xf32>
    %113 = vector.shape_cast %112 : vector<8xf32> to vector<8x1xf32>
    %114 = arith.addf %81, %113 : vector<8x1xf32>
    %115 = arith.mulf %111, %111 : vector<8x256xf32>
    %cst_100 = arith.constant dense<0.000000e+00> : vector<8xf32>
    %116 = vector.multi_reduction <add>, %115, %cst_100 [1] : vector<8x256xf32> to vector<8xf32>
    %117 = vector.shape_cast %116 : vector<8xf32> to vector<8x1xf32>
    %118 = arith.addf %82, %117 : vector<8x1xf32>
    %c0_101 = arith.constant 0 : index
    %c0_102 = arith.constant 0 : index
    %c0_103 = arith.constant 0 : index
    %119 = vector.load %arg6[%c0_101, %c0_102, %c0_103] : memref<2x8x256xf32, #tpu.memory_space<vmem>>, vector<1x8x256xf32>
    %120 = vector.shape_cast %119 : vector<1x8x256xf32> to vector<8x256xf32>
    %121 = vector.shape_cast %109 : vector<8x256xf32> to vector<1x8x256xf32>
    tpu.vector_store %arg6[%c0_101, %c0_102, %c0_103], %121 {strides = array<i32>} : memref<2x8x256xf32, #tpu.memory_space<vmem>>, vector<1x8x256xf32>,
    %c1_104 = arith.constant 1 : index
    %c0_105 = arith.constant 0 : index
    %c0_106 = arith.constant 0 : index
    %122 = vector.load %arg7[%c1_104, %c0_105, %c0_106] : memref<2x8x256xf32, #tpu.memory_space<vmem>>, vector<1x8x256xf32>
    %123 = vector.shape_cast %122 : vector<1x8x256xf32> to vector<8x256xf32>
    %124 = vector.broadcast %73 : vector<8x1xf32> to vector<8x256xf32>
    %125 = arith.subf %123, %124 : vector<8x256xf32>
    %126 = vector.broadcast %80 : vector<8x1xf32> to vector<8x256xf32>
    %127 = arith.mulf %125, %126 : vector<8x256xf32>
    %cst_107 = arith.constant 0.000000e+00 : f32
    %128 = vector.broadcast %cst_107 : f32 to vector<8x256xf32>
    %129 = arith.maximumf %127, %128 : vector<8x256xf32>
    %c0_108 = arith.constant 0 : index
    %c0_109 = arith.constant 0 : index
    %130 = vector.load %arg9[%c0_108, %c0_109] : memref<72x256xf32, #tpu.memory_space<vmem>>, vector<8x256xf32>
    tpu.vector_store %arg9[%c0_108, %c0_109], %129 {strides = array<i32>} : memref<72x256xf32, #tpu.memory_space<vmem>>, vector<8x256xf32>,
    %c255_i32_110 = arith.constant 255 : i32
    %131 = tpu.dynamic_rotate %129 by %c255_i32_110 dim 1 : vector<8x256xf32>, i32 -> vector<8x256xf32>
    %c8_111 = arith.constant 8 : index
    %c0_112 = arith.constant 0 : index
    %132 = vector.load %arg9[%c8_111, %c0_112] : memref<72x256xf32, #tpu.memory_space<vmem>>, vector<8x256xf32>
    tpu.vector_store %arg9[%c8_111, %c0_112], %131 {strides = array<i32>} : memref<72x256xf32, #tpu.memory_space<vmem>>, vector<8x256xf32>,
    %c254_i32_113 = arith.constant 254 : i32
    %133 = tpu.dynamic_rotate %129 by %c254_i32_113 dim 1 : vector<8x256xf32>, i32 -> vector<8x256xf32>
    %c16_114 = arith.constant 16 : index
    %c0_115 = arith.constant 0 : index
    %134 = vector.load %arg9[%c16_114, %c0_115] : memref<72x256xf32, #tpu.memory_space<vmem>>, vector<8x256xf32>
    tpu.vector_store %arg9[%c16_114, %c0_115], %133 {strides = array<i32>} : memref<72x256xf32, #tpu.memory_space<vmem>>, vector<8x256xf32>,
    %c240_i32_116 = arith.constant 240 : i32
    %135 = tpu.dynamic_rotate %129 by %c240_i32_116 dim 1 : vector<8x256xf32>, i32 -> vector<8x256xf32>
    %c24_117 = arith.constant 24 : index
    %c0_118 = arith.constant 0 : index
    %136 = vector.load %arg9[%c24_117, %c0_118] : memref<72x256xf32, #tpu.memory_space<vmem>>, vector<8x256xf32>
    tpu.vector_store %arg9[%c24_117, %c0_118], %135 {strides = array<i32>} : memref<72x256xf32, #tpu.memory_space<vmem>>, vector<8x256xf32>,
    %c239_i32_119 = arith.constant 239 : i32
    %137 = tpu.dynamic_rotate %129 by %c239_i32_119 dim 1 : vector<8x256xf32>, i32 -> vector<8x256xf32>
    %c32_120 = arith.constant 32 : index
    %c0_121 = arith.constant 0 : index
    %138 = vector.load %arg9[%c32_120, %c0_121] : memref<72x256xf32, #tpu.memory_space<vmem>>, vector<8x256xf32>
    tpu.vector_store %arg9[%c32_120, %c0_121], %137 {strides = array<i32>} : memref<72x256xf32, #tpu.memory_space<vmem>>, vector<8x256xf32>,
    %c238_i32_122 = arith.constant 238 : i32
    %139 = tpu.dynamic_rotate %129 by %c238_i32_122 dim 1 : vector<8x256xf32>, i32 -> vector<8x256xf32>
    %c40_123 = arith.constant 40 : index
    %c0_124 = arith.constant 0 : index
    %140 = vector.load %arg9[%c40_123, %c0_124] : memref<72x256xf32, #tpu.memory_space<vmem>>, vector<8x256xf32>
    tpu.vector_store %arg9[%c40_123, %c0_124], %139 {strides = array<i32>} : memref<72x256xf32, #tpu.memory_space<vmem>>, vector<8x256xf32>,
    %c224_i32_125 = arith.constant 224 : i32
    %141 = tpu.dynamic_rotate %129 by %c224_i32_125 dim 1 : vector<8x256xf32>, i32 -> vector<8x256xf32>
    %c48_126 = arith.constant 48 : index
    %c0_127 = arith.constant 0 : index
    %142 = vector.load %arg9[%c48_126, %c0_127] : memref<72x256xf32, #tpu.memory_space<vmem>>, vector<8x256xf32>
    tpu.vector_store %arg9[%c48_126, %c0_127], %141 {strides = array<i32>} : memref<72x256xf32, #tpu.memory_space<vmem>>, vector<8x256xf32>,
    %c223_i32_128 = arith.constant 223 : i32
    %143 = tpu.dynamic_rotate %129 by %c223_i32_128 dim 1 : vector<8x256xf32>, i32 -> vector<8x256xf32>
    %c56_129 = arith.constant 56 : index
    %c0_130 = arith.constant 0 : index
    %144 = vector.load %arg9[%c56_129, %c0_130] : memref<72x256xf32, #tpu.memory_space<vmem>>, vector<8x256xf32>
    tpu.vector_store %arg9[%c56_129, %c0_130], %143 {strides = array<i32>} : memref<72x256xf32, #tpu.memory_space<vmem>>, vector<8x256xf32>,
    %c222_i32_131 = arith.constant 222 : i32
    %145 = tpu.dynamic_rotate %129 by %c222_i32_131 dim 1 : vector<8x256xf32>, i32 -> vector<8x256xf32>
    %c64_132 = arith.constant 64 : index
    %c0_133 = arith.constant 0 : index
    %146 = vector.load %arg9[%c64_132, %c0_133] : memref<72x256xf32, #tpu.memory_space<vmem>>, vector<8x256xf32>
    tpu.vector_store %arg9[%c64_132, %c0_133], %145 {strides = array<i32>} : memref<72x256xf32, #tpu.memory_space<vmem>>, vector<8x256xf32>,
    %c0_134 = arith.constant 0 : index
    %c0_135 = arith.constant 0 : index
    %147 = vector.load %arg9[%c0_134, %c0_135] : memref<72x256xf32, #tpu.memory_space<vmem>>, vector<72x256xf32>
    %cst_136 = arith.constant dense<0.000000e+00> : vector<8x256xf32>
    %148 = tpu.matmul %3, %147, %cst_136 {dimension_numbers = #tpu.dot_dimension_numbers<[1], [0], [0], [1], [0, 0, 1, 1], [], []>} : vector<8x72xf32>, vector<72x256xf32>, vector<8x256xf32> -> vector<8x256xf32>
    %149 = vector.broadcast %1 : vector<1x256xf32> to vector<8x256xf32>
    %150 = arith.mulf %148, %149 : vector<8x256xf32>
    %cst_137 = arith.constant dense<0.000000e+00> : vector<8xf32>
    %151 = vector.multi_reduction <add>, %150, %cst_137 [1] : vector<8x256xf32> to vector<8xf32>
    %152 = vector.shape_cast %151 : vector<8xf32> to vector<8x1xf32>
    %153 = arith.addf %114, %152 : vector<8x1xf32>
    %154 = arith.mulf %150, %150 : vector<8x256xf32>
    %cst_138 = arith.constant dense<0.000000e+00> : vector<8xf32>
    %155 = vector.multi_reduction <add>, %154, %cst_138 [1] : vector<8x256xf32> to vector<8xf32>
    %156 = vector.shape_cast %155 : vector<8xf32> to vector<8x1xf32>
    %157 = arith.addf %118, %156 : vector<8x1xf32>
    %c1_139 = arith.constant 1 : index
    %c0_140 = arith.constant 0 : index
    %c0_141 = arith.constant 0 : index
    %158 = vector.load %arg6[%c1_139, %c0_140, %c0_141] : memref<2x8x256xf32, #tpu.memory_space<vmem>>, vector<1x8x256xf32>
    %159 = vector.shape_cast %158 : vector<1x8x256xf32> to vector<8x256xf32>
    %160 = vector.shape_cast %148 : vector<8x256xf32> to vector<1x8x256xf32>
    tpu.vector_store %arg6[%c1_139, %c0_140, %c0_141], %160 {strides = array<i32>} : memref<2x8x256xf32, #tpu.memory_space<vmem>>, vector<1x8x256xf32>,
    %cst_142 = arith.constant 0.00347222225 : f32
    %161 = vector.broadcast %cst_142 : f32 to vector<8x1xf32>
    %162 = arith.mulf %153, %161 : vector<8x1xf32>
    %cst_143 = arith.constant 0.00347222225 : f32
    %163 = vector.broadcast %cst_143 : f32 to vector<8x1xf32>
    %164 = arith.mulf %157, %163 : vector<8x1xf32>
    %165 = arith.mulf %162, %162 : vector<8x1xf32>
    %166 = arith.subf %164, %165 : vector<8x1xf32>
    %cst_144 = arith.constant 9.99999974E-6 : f32
    %167 = vector.broadcast %cst_144 : f32 to vector<8x1xf32>
    %168 = arith.addf %166, %167 : vector<8x1xf32>
    %169 = math.rsqrt %168 : vector<8x1xf32>
    %c0_145 = arith.constant 0 : index
    %c0_146 = arith.constant 0 : index
    %c0_147 = arith.constant 0 : index
    %170 = vector.load %arg6[%c0_145, %c0_146, %c0_147] : memref<2x8x256xf32, #tpu.memory_space<vmem>>, vector<1x8x256xf32>
    %171 = vector.shape_cast %170 : vector<1x8x256xf32> to vector<8x256xf32>
    %172 = vector.broadcast %162 : vector<8x1xf32> to vector<8x256xf32>
    %173 = arith.subf %171, %172 : vector<8x256xf32>
    %174 = vector.broadcast %169 : vector<8x1xf32> to vector<8x256xf32>
    %175 = arith.mulf %173, %174 : vector<8x256xf32>
    %cst_148 = arith.constant 0.000000e+00 : f32
    %176 = vector.broadcast %cst_148 : f32 to vector<8x256xf32>
    %177 = arith.maximumf %175, %176 : vector<8x256xf32>
    %178 = vector.broadcast %1 : vector<1x256xf32> to vector<8x256xf32>
    %179 = arith.mulf %177, %178 : vector<8x256xf32>
    %c0_149 = arith.constant 0 : index
    %c0_150 = arith.constant 0 : index
    %c0_151 = arith.constant 0 : index
    %180 = vector.load %arg6[%c0_149, %c0_150, %c0_151] : memref<2x8x256xf32, #tpu.memory_space<vmem>>, vector<1x8x256xf32>
    %181 = vector.shape_cast %180 : vector<1x8x256xf32> to vector<8x256xf32>
    %182 = vector.shape_cast %179 : vector<8x256xf32> to vector<1x8x256xf32>
    tpu.vector_store %arg6[%c0_149, %c0_150, %c0_151], %182 {strides = array<i32>} : memref<2x8x256xf32, #tpu.memory_space<vmem>>, vector<1x8x256xf32>,
    %c1_152 = arith.constant 1 : index
    %c0_153 = arith.constant 0 : index
    %c0_154 = arith.constant 0 : index
    %183 = vector.load %arg6[%c1_152, %c0_153, %c0_154] : memref<2x8x256xf32, #tpu.memory_space<vmem>>, vector<1x8x256xf32>
    %184 = vector.shape_cast %183 : vector<1x8x256xf32> to vector<8x256xf32>
    %185 = vector.broadcast %162 : vector<8x1xf32> to vector<8x256xf32>
    %186 = arith.subf %184, %185 : vector<8x256xf32>
    %187 = vector.broadcast %169 : vector<8x1xf32> to vector<8x256xf32>
    %188 = arith.mulf %186, %187 : vector<8x256xf32>
    %cst_155 = arith.constant 0.000000e+00 : f32
    %189 = vector.broadcast %cst_155 : f32 to vector<8x256xf32>
    %190 = arith.maximumf %188, %189 : vector<8x256xf32>
    %191 = vector.broadcast %1 : vector<1x256xf32> to vector<8x256xf32>
    %192 = arith.mulf %190, %191 : vector<8x256xf32>
    %c1_156 = arith.constant 1 : index
    %c0_157 = arith.constant 0 : index
    %c0_158 = arith.constant 0 : index
    %193 = vector.load %arg6[%c1_156, %c0_157, %c0_158] : memref<2x8x256xf32, #tpu.memory_space<vmem>>, vector<1x8x256xf32>
    %194 = vector.shape_cast %193 : vector<1x8x256xf32> to vector<8x256xf32>
    %195 = vector.shape_cast %192 : vector<8x256xf32> to vector<1x8x256xf32>
    tpu.vector_store %arg6[%c1_156, %c0_157, %c0_158], %195 {strides = array<i32>} : memref<2x8x256xf32, #tpu.memory_space<vmem>>, vector<1x8x256xf32>,
    return
  }
  func.func @transform_0(%arg0: i32) -> (i32, i32, i32) {
    %c0_i32 = arith.constant 0 : i32
    %c0_i32_0 = arith.constant 0 : i32
    %c0_i32_1 = arith.constant 0 : i32
    %c0_i32_2 = arith.constant 0 : i32
    return %c0_i32, %c0_i32_0, %c0_i32_1 : i32, i32, i32
  }
  func.func @transform_1(%arg0: i32) -> (i32, i32) {
    %c0_i32 = arith.constant 0 : i32
    %c0_i32_0 = arith.constant 0 : i32
    %c0_i32_1 = arith.constant 0 : i32
    return %c0_i32, %c0_i32_0 : i32, i32
  }
  func.func @transform_2(%arg0: i32) -> (i32, i32) {
    %c0_i32 = arith.constant 0 : i32
    %c0_i32_0 = arith.constant 0 : i32
    %c0_i32_1 = arith.constant 0 : i32
    return %c0_i32, %c0_i32_0 : i32, i32
  }
  func.func @transform_3(%arg0: i32) -> (i32, i32) {
    %c0_i32 = arith.constant 0 : i32
    %c0_i32_0 = arith.constant 0 : i32
    %c0_i32_1 = arith.constant 0 : i32
    return %c0_i32, %c0_i32_0 : i32, i32
  }
  func.func @transform_4(%arg0: i32) -> (i32, i32) {
    %c0_i32 = arith.constant 0 : i32
    %c0_i32_0 = arith.constant 0 : i32
    %c0_i32_1 = arith.constant 0 : i32
    return %c0_i32, %c0_i32_0 : i32, i32
  }
  func.func @transform_5(%arg0: i32) -> (i32, i32, i32) {
    %c0_i32 = arith.constant 0 : i32
    %c0_i32_0 = arith.constant 0 : i32
    %c0_i32_1 = arith.constant 0 : i32
    %c0_i32_2 = arith.constant 0 : i32
    return %c0_i32, %c0_i32_0, %c0_i32_1 : i32, i32, i32
  }
}

</mosaic_0001>

<llo_original>
// kernel: block_forward.1
$region0: #{block_forward.1}
  #allocation0 [shape = 'u32[]', space=smem, size = 0x4, offset = 0x4, fixed_abs, tag = 'smem constant byte address 0x4 - core index']
  #allocation1 [shape = 'u32[144,128]{1,0:T(1,128)}', space=vmem, size = 0x12000, scoped, tag = 'internal scratch']
  #allocation2 [shape = 'f32[2,8,256]{2,1,0:T(8,128)}', space=vmem, size = 0x4000, scoped, tag = 'scratch operand']
  #allocation3 [shape = 'f32[36,256]{1,0:T(8,128)}', space=vmem, size = 0xa000, scoped, tag = 'scratch operand']
  #allocation4 [shape = 'f32[72,256]{1,0:T(8,128)}', space=vmem, size = 0x12000, scoped, tag = 'scratch operand']
  %s0 = inlined_call_operand.vmem [shape: f32[2,4,256], index: 0, kind: input, shape index: {}]
  %s1 = inlined_call_operand.vmem [shape: f32[8,36], index: 1, kind: input, shape index: {}]
  %s2 = inlined_call_operand.vmem [shape: f32[8,72], index: 2, kind: input, shape index: {}]
  %s3 = inlined_call_operand.vmem [shape: f32[1,256], index: 3, kind: input, shape index: {}]
  %s4 = inlined_call_operand.vmem [shape: f32[1,256], index: 4, kind: input, shape index: {}]
  %s5 = inlined_call_operand.vmem [shape: f32[2,8,256], index: 5, kind: output, shape index: {}]
  %s6 = sld [smem:[#allocation0]]
  $region30: #{block_forward.1} parent=0
    _
  %s8 = ssub.s32 1, %s6
  %s9 = scalar_select 0, %s8, %s6
  // Predicated region
  $region2: #{block_forward.1} parent=0 // pred_check
    _
  $region3: #{block_forward.1} parent=0 // pred_check_branch
    %11 = sbr.rel (0) target = $region5
  $region4: #{block_forward.1} parent=0 // pred_region
    _
  $region5: #{block_forward.1} parent=0 // pred_fallthru
    _
  // Predicated region
  $region6: #{block_forward.1} parent=0 // pred_check
    _
  $region7: #{block_forward.1} parent=0 // pred_check_branch
    %13 = sbr.rel (0) target = $region9
  $region8: #{block_forward.1} parent=0 // pred_region
    _
  $region9: #{block_forward.1} parent=0 // pred_fallthru
    _
  // Predicated region
  $region10: #{block_forward.1} parent=0 // pred_check
    _
  $region11: #{block_forward.1} parent=0 // pred_check_branch
    %15 = sbr.rel (0) target = $region13
  $region12: #{block_forward.1} parent=0 // pred_region
    _
  $region13: #{block_forward.1} parent=0 // pred_fallthru
    _
  // Predicated region
  $region14: #{block_forward.1} parent=0 // pred_check
    _
  $region15: #{block_forward.1} parent=0 // pred_check_branch
    %17 = sbr.rel (0) target = $region17
  $region16: #{block_forward.1} parent=0 // pred_region
    _
  $region17: #{block_forward.1} parent=0 // pred_fallthru
    _
  // Predicated region
  $region18: #{block_forward.1} parent=0 // pred_check
    _
  $region19: #{block_forward.1} parent=0 // pred_check_branch
    %19 = sbr.rel (0) target = $region21
  $region20: #{block_forward.1} parent=0 // pred_region
    _
  $region21: #{block_forward.1} parent=0 // pred_fallthru
    _
  %v20 = vld [vmem:[%s3] sm:$0x3]
  %v21 = vld [vmem:[%s4] sm:$0x3]
  %v22 = vld [vmem:[%s1] sm:$0xff]
  %v23 = vld [vmem:[%s2] sm:$0xff]
  %v24 = vld [vmem:[%s0] sm:$0xff]
  %v26 = vcombine.high %v24, %v24
  %28 = vst [vmem:[#allocation3] sm:$0xf] %v24
  %29 = vst [vmem:[#allocation3 + $0x8] sm:$0xf] %v26
  %30 = vrot.lane.b32.xlu0 %v24, 127
  %v31 = vpop.permute.xlu0 %30
  %32 = vrot.lane.b32.xlu0 %v26, 127
  %v33 = vpop.permute.xlu0 %32
  %v34 = vlaneseq
  %v35 = vand.u32 %v34, 127
  %vm36 = vcmp.lt.s32.totalorder %v35, 127
  %v37 = vsel %vm36, %v31, %v33
  %v38 = vsel %vm36, %v33, %v31
  %v41 = vrot.slane %v37, 4
  %v42 = vrot.slane %v38, 4
  %45 = vst [vmem:[#allocation3] sm:$0xf0] %v41
  %46 = vst [vmem:[#allocation3 + $0x8] sm:$0xf0] %v42
  %47 = vrot.lane.b32.xlu0 %v24, 126
  %v48 = vpop.permute.xlu0 %47
  %49 = vrot.lane.b32.xlu0 %v26, 126
  %v50 = vpop.permute.xlu0 %49
  %vm51 = vcmp.lt.s32.totalorder %v35, 126
  %v52 = vsel %vm51, %v48, %v50
  %v53 = vsel %vm51, %v50, %v48
  %54 = vst [vmem:[#allocation3 + $0x10] sm:$0xf] %v52
  %55 = vst [vmem:[#allocation3 + $0x18] sm:$0xf] %v53
  %56 = vrot.lane.b32.xlu0 %v24, 112
  %v57 = vpop.permute.xlu0 %56
  %58 = vrot.lane.b32.xlu0 %v26, 112
  %v59 = vpop.permute.xlu0 %58
  %vm60 = vcmp.lt.s32.totalorder %v35, 112
  %v61 = vsel %vm60, %v57, %v59
  %v62 = vsel %vm60, %v59, %v57
  %v65 = vrot.slane %v61, 4
  %v66 = vrot.slane %v62, 4
  %69 = vst [vmem:[#allocation3 + $0x10] sm:$0xf0] %v65
  %70 = vst [vmem:[#allocation3 + $0x18] sm:$0xf0] %v66
  %71 = vrot.lane.b32.xlu0 %v24, 111
  %v72 = vpop.permute.xlu0 %71
  %73 = vrot.lane.b32.xlu0 %v26, 111
  %v74 = vpop.permute.xlu0 %73
  %vm75 = vcmp.lt.s32.totalorder %v35, 111
  %v76 = vsel %vm75, %v72, %v74
  %v77 = vsel %vm75, %v74, %v72
  %78 = vst [vmem:[#allocation3 + $0x20] sm:$0xf] %v76
  %79 = vst [vmem:[#allocation3 + $0x28] sm:$0xf] %v77
  %80 = vrot.lane.b32.xlu0 %v24, 110
  %v81 = vpop.permute.xlu0 %80
  %82 = vrot.lane.b32.xlu0 %v26, 110
  %v83 = vpop.permute.xlu0 %82
  %vm84 = vcmp.lt.s32.totalorder %v35, 110
  %v85 = vsel %vm84, %v81, %v83
  %v86 = vsel %vm84, %v83, %v81
  %v89 = vrot.slane %v85, 4
  %v90 = vrot.slane %v86, 4
  %93 = vst [vmem:[#allocation3 + $0x20] sm:$0xf0] %v89
  %94 = vst [vmem:[#allocation3 + $0x28] sm:$0xf0] %v90
  %95 = vrot.lane.b32.xlu0 %v24, 96
  %v96 = vpop.permute.xlu0 %95
  %97 = vrot.lane.b32.xlu0 %v26, 96
  %v98 = vpop.permute.xlu0 %97
  %vm99 = vcmp.lt.s32.totalorder %v35, 96
  %v100 = vsel %vm99, %v96, %v98
  %v101 = vsel %vm99, %v98, %v96
  %102 = vst [vmem:[#allocation3 + $0x30] sm:$0xf] %v100
  %103 = vst [vmem:[#allocation3 + $0x38] sm:$0xf] %v101
  %104 = vrot.lane.b32.xlu0 %v24, 95
  %v105 = vpop.permute.xlu0 %104
  %106 = vrot.lane.b32.xlu0 %v26, 95
  %v107 = vpop.permute.xlu0 %106
  %vm108 = vcmp.lt.s32.totalorder %v35, 95
  %v109 = vsel %vm108, %v105, %v107
  %v110 = vsel %vm108, %v107, %v105
  %v113 = vrot.slane %v109, 4
  %v114 = vrot.slane %v110, 4
  %117 = vst [vmem:[#allocation3 + $0x30] sm:$0xf0] %v113
  %118 = vst [vmem:[#allocation3 + $0x38] sm:$0xf0] %v114
  %119 = vrot.lane.b32.xlu0 %v24, 94
  %v120 = vpop.permute.xlu0 %119
  %121 = vrot.lane.b32.xlu0 %v26, 94
  %v122 = vpop.permute.xlu0 %121
  %vm123 = vcmp.lt.s32.totalorder %v35, 94
  %v124 = vsel %vm123, %v120, %v122
  %v125 = vsel %vm123, %v122, %v120
  %126 = vst [vmem:[#allocation3 + $0x40] sm:$0xf] %v124
  %127 = vst [vmem:[#allocation3 + $0x48] sm:$0xf] %v125
  %v128 = vld [vmem:[#allocation3] sm:$0xff]
  %v129 = vld [vmem:[#allocation3 + $0x8] sm:$0xff]
  %v130 = vld [vmem:[#allocation3 + $0x10] sm:$0xff]
  %v131 = vld [vmem:[#allocation3 + $0x18] sm:$0xff]
  %v132 = vld [vmem:[#allocation3 + $0x20] sm:$0xff]
  %v133 = vld [vmem:[#allocation3 + $0x28] sm:$0xff]
  %v134 = vld [vmem:[#allocation3 + $0x30] sm:$0xff]
  %v135 = vld [vmem:[#allocation3 + $0x38] sm:$0xff]
  %v136 = vld [vmem:[#allocation3 + $0x40] sm:$0xf]
  %v137 = vld [vmem:[#allocation3 + $0x48] sm:$0xf]
  %vm138 = vcmask 293888
  %v140 = vsel %vm138, %v22, 0
  %vm142 = vcmask 1043456
  %v144 = vsel %vm142, %v136, 0
  %v147 = vsel %vm142, %v137, 0
  %149 = vmatprep.subr.mxu0 0.0
  %150 = vmatpush1.msra.mxu0 0.0
  %151 = vmatprep.subr.mxu0 0.0
  %152 = vmatpush1.msra.mxu0 0.0
  %153 = vmatprep.subr.mxu0 0.0
  %154 = vmatpush1.msra.mxu0 0.0
  %155 = vmatprep.subr.mxu0 0.0
  %156 = vmatpush1.msra.mxu0 0.0
  %157 = vmatprep.subr.mxu0 0.0
  %158 = vmatpush1.msra.mxu0 0.0
  %159 = vmatprep.subr.mxu0 0.0
  %160 = vmatpush1.msra.mxu0 0.0
  %161 = vmatprep.subr.mxu0 0.0
  %162 = vmatpush1.msra.mxu0 0.0
  %163 = vmatprep.subr.mxu0 0.0
  %164 = vmatpush1.msra.mxu0 0.0
  %165 = vmatprep.subr.mxu0 0.0
  %166 = vmatpush1.msra.mxu0 0.0
  %167 = vmatprep.subr.mxu0 0.0
  %168 = vmatpush1.msra.mxu0 0.0
  %169 = vmatprep.subr.mxu0 0.0
  %170 = vmatpush1.msra.mxu0 0.0
  %171 = vmatprep.subr.mxu0 %v147
  %172 = vmatpush1.msra.mxu0 %v144
  %173 = vmatprep.subr.mxu0 %v135
  %174 = vmatpush1.msra.mxu0 %v134
  %175 = vmatprep.subr.mxu0 %v133
  %176 = vmatpush1.msra.mxu0 %v132
  %177 = vmatprep.subr.mxu0 %v131
  %178 = vmatpush1.msra.mxu0 %v130
  %179 = vmatprep.subr.mxu0 %v129
  %180 = vmatpush1.msra.mxu0 %v128
  %181 = vmatprep.subr.mxu0 0.0
  %182 = vmatpush2.msra.mxu0 0.0
  %183 = vmatprep.subr.mxu0 0.0
  %184 = vmatpush2.msra.mxu0 0.0
  %185 = vmatprep.subr.mxu0 0.0
  %186 = vmatpush2.msra.mxu0 0.0
  %187 = vmatprep.subr.mxu0 0.0
  %188 = vmatpush2.msra.mxu0 0.0
  %189 = vmatprep.subr.mxu0 0.0
  %190 = vmatpush2.msra.mxu0 0.0
  %191 = vmatprep.subr.mxu0 0.0
  %192 = vmatpush2.msra.mxu0 0.0
  %193 = vmatprep.subr.mxu0 0.0
  %194 = vmatpush2.msra.mxu0 0.0
  %195 = vmatprep.subr.mxu0 0.0
  %196 = vmatpush2.msra.mxu0 0.0
  %197 = vmatprep.subr.mxu0 0.0
  %198 = vmatpush2.msra.mxu0 0.0
  %199 = vmatprep.subr.mxu0 0.0
  %200 = vmatpush2.msra.mxu0 0.0
  %201 = vmatprep.subr.mxu0 0.0
  %202 = vmatpush2.msra.mxu0 0.0
  %203 = vmatprep.subr.mxu0 0.0
  %204 = vmatpush2.msra.mxu0 0.0
  %205 = vmatprep.subr.mxu0 0.0
  %206 = vmatpush2.msra.mxu0 0.0
  %207 = vmatprep.subr.mxu0 0.0
  %208 = vmatpush2.msra.mxu0 0.0
  %209 = vmatprep.subr.mxu0 0.0
  %210 = vmatpush2.msra.mxu0 0.0
  %211 = vmatprep.subr.mxu0 0.0
  %212 = vmatpush2.msra.mxu0 0.0
  %213 = vmatprep.mubr.f32.mxu0 0.0
  %214 = vmatmul.mubr.f32.gmra.mxu0 %v140
  %v215 = vpop.f32.mrf.mxu0
  %v216 = vadd.f32 0.0, %v215
  %v217 = vpop.f32.mrf.mxu0
  %v218 = vadd.f32 0.0, %v217
  %219 = vdwg.mxu0
  %v221 = vlaneseq
  %v222 = vshrl.u32 %v221, 7
  %v223 = vsub.s32 0, %v222
  %v224 = vrot.slane %v20, %v223
  %v225 = vlaneseq
  %v226 = vshrl.u32 %v225, 7
  %v227 = vsub.s32 1, %v226
  %v228 = vrot.slane %v20, %v227
  %v231 = vmul.f32 %v216, %v224
  %v232 = vmul.f32 %v218, %v228
  %v233 = vadd.f32 %v231, %v232
  %234 = vadd.xlane.f32.xlu0 %v233
  %v235 = vpop.xlane.xlu0 %234
  %v236 = vadd.f32 %v235, 0.0
  %v237 = vmul.f32 %v231, %v231
  %v238 = vmul.f32 %v232, %v232
  %v239 = vadd.f32 %v237, %v238
  %240 = vadd.xlane.f32.xlu0 %v239
  %v241 = vpop.xlane.xlu0 %240
  %v242 = vadd.f32 %v241, 0.0
  %243 = vst [vmem:[#allocation2] sm:$0xff] %v216
  %244 = vst [vmem:[#allocation2 + $0x8] sm:$0xff] %v218
  %s245 = scalar_lea.vmem %s0, 8
  %v246 = vld [vmem:[%s245] sm:$0xff]
  %v248 = vcombine.high %v246, %v246
  %250 = vst [vmem:[#allocation3] sm:$0xf] %v246
  %251 = vst [vmem:[#allocation3 + $0x8] sm:$0xf] %v248
  %252 = vrot.lane.b32.xlu0 %v246, 127
  %v253 = vpop.permute.xlu0 %252
  %254 = vrot.lane.b32.xlu0 %v248, 127
  %v255 = vpop.permute.xlu0 %254
  %v256 = vsel %vm36, %v253, %v255
  %v257 = vsel %vm36, %v255, %v253
  %v260 = vrot.slane %v256, 4
  %v261 = vrot.slane %v257, 4
  %264 = vst [vmem:[#allocation3] sm:$0xf0] %v260
  %265 = vst [vmem:[#allocation3 + $0x8] sm:$0xf0] %v261
  %266 = vrot.lane.b32.xlu0 %v246, 126
  %v267 = vpop.permute.xlu0 %266
  %268 = vrot.lane.b32.xlu0 %v248, 126
  %v269 = vpop.permute.xlu0 %268
  %v270 = vsel %vm51, %v267, %v269
  %v271 = vsel %vm51, %v269, %v267
  %272 = vst [vmem:[#allocation3 + $0x10] sm:$0xf] %v270
  %273 = vst [vmem:[#allocation3 + $0x18] sm:$0xf] %v271
  %274 = vrot.lane.b32.xlu0 %v246, 112
  %v275 = vpop.permute.xlu0 %274
  %276 = vrot.lane.b32.xlu0 %v248, 112
  %v277 = vpop.permute.xlu0 %276
  %v278 = vsel %vm60, %v275, %v277
  %v279 = vsel %vm60, %v277, %v275
  %v282 = vrot.slane %v278, 4
  %v283 = vrot.slane %v279, 4
  %286 = vst [vmem:[#allocation3 + $0x10] sm:$0xf0] %v282
  %287 = vst [vmem:[#allocation3 + $0x18] sm:$0xf0] %v283
  %288 = vrot.lane.b32.xlu0 %v246, 111
  %v289 = vpop.permute.xlu0 %288
  %290 = vrot.lane.b32.xlu0 %v248, 111
  %v291 = vpop.permute.xlu0 %290
  %v292 = vsel %vm75, %v289, %v291
  %v293 = vsel %vm75, %v291, %v289
  %294 = vst [vmem:[#allocation3 + $0x20] sm:$0xf] %v292
  %295 = vst [vmem:[#allocation3 + $0x28] sm:$0xf] %v293
  %296 = vrot.lane.b32.xlu0 %v246, 110
  %v297 = vpop.permute.xlu0 %296
  %298 = vrot.lane.b32.xlu0 %v248, 110
  %v299 = vpop.permute.xlu0 %298
  %v300 = vsel %vm84, %v297, %v299
  %v301 = vsel %vm84, %v299, %v297
  %v304 = vrot.slane %v300, 4
  %v305 = vrot.slane %v301, 4
  %308 = vst [vmem:[#allocation3 + $0x20] sm:$0xf0] %v304
  %309 = vst [vmem:[#allocation3 + $0x28] sm:$0xf0] %v305
  %310 = vrot.lane.b32.xlu0 %v246, 96
  %v311 = vpop.permute.xlu0 %310
  %312 = vrot.lane.b32.xlu0 %v248, 96
  %v313 = vpop.permute.xlu0 %312
  %v314 = vsel %vm99, %v311, %v313
  %v315 = vsel %vm99, %v313, %v311
  %316 = vst [vmem:[#allocation3 + $0x30] sm:$0xf] %v314
  %317 = vst [vmem:[#allocation3 + $0x38] sm:$0xf] %v315
  %318 = vrot.lane.b32.xlu0 %v246, 95
  %v319 = vpop.permute.xlu0 %318
  %320 = vrot.lane.b32.xlu0 %v248, 95
  %v321 = vpop.permute.xlu0 %320
  %v322 = vsel %vm108, %v319, %v321
  %v323 = vsel %vm108, %v321, %v319
  %v326 = vrot.slane %v322, 4
  %v327 = vrot.slane %v323, 4
  %330 = vst [vmem:[#allocation3 + $0x30] sm:$0xf0] %v326
  %331 = vst [vmem:[#allocation3 + $0x38] sm:$0xf0] %v327
  %332 = vrot.lane.b32.xlu0 %v246, 94
  %v333 = vpop.permute.xlu0 %332
  %334 = vrot.lane.b32.xlu0 %v248, 94
  %v335 = vpop.permute.xlu0 %334
  %v336 = vsel %vm123, %v333, %v335
  %v337 = vsel %vm123, %v335, %v333
  %338 = vst [vmem:[#allocation3 + $0x40] sm:$0xf] %v336
  %339 = vst [vmem:[#allocation3 + $0x48] sm:$0xf] %v337
  %v340 = vld [vmem:[#allocation3] sm:$0xff]
  %v341 = vld [vmem:[#allocation3 + $0x8] sm:$0xff]
  %v342 = vld [vmem:[#allocation3 + $0x10] sm:$0xff]
  %v343 = vld [vmem:[#allocation3 + $0x18] sm:$0xff]
  %v344 = vld [vmem:[#allocation3 + $0x20] sm:$0xff]
  %v345 = vld [vmem:[#allocation3 + $0x28] sm:$0xff]
  %v346 = vld [vmem:[#allocation3 + $0x30] sm:$0xff]
  %v347 = vld [vmem:[#allocation3 + $0x38] sm:$0xff]
  %v348 = vld [vmem:[#allocation3 + $0x40] sm:$0xf]
  %v349 = vld [vmem:[#allocation3 + $0x48] sm:$0xf]
  %v351 = vsel %vm142, %v348, 0
  %v354 = vsel %vm142, %v349, 0
  %356 = vmatprep.subr.mxu0 0.0
  %357 = vmatpush1.msra.mxu0 0.0
  %358 = vmatprep.subr.mxu0 0.0
  %359 = vmatpush1.msra.mxu0 0.0
  %360 = vmatprep.subr.mxu0 0.0
  %361 = vmatpush1.msra.mxu0 0.0
  %362 = vmatprep.subr.mxu0 0.0
  %363 = vmatpush1.msra.mxu0 0.0
  %364 = vmatprep.subr.mxu0 0.0
  %365 = vmatpush1.msra.mxu0 0.0
  %366 = vmatprep.subr.mxu0 0.0
  %367 = vmatpush1.msra.mxu0 0.0
  %368 = vmatprep.subr.mxu0 0.0
  %369 = vmatpush1.msra.mxu0 0.0
  %370 = vmatprep.subr.mxu0 0.0
  %371 = vmatpush1.msra.mxu0 0.0
  %372 = vmatprep.subr.mxu0 0.0
  %373 = vmatpush1.msra.mxu0 0.0
  %374 = vmatprep.subr.mxu0 0.0
  %375 = vmatpush1.msra.mxu0 0.0
  %376 = vmatprep.subr.mxu0 0.0
  %377 = vmatpush1.msra.mxu0 0.0
  %378 = vmatprep.subr.mxu0 %v354
  %379 = vmatpush1.msra.mxu0 %v351
  %380 = vmatprep.subr.mxu0 %v347
  %381 = vmatpush1.msra.mxu0 %v346
  %382 = vmatprep.subr.mxu0 %v345
  %383 = vmatpush1.msra.mxu0 %v344
  %384 = vmatprep.subr.mxu0 %v343
  %385 = vmatpush1.msra.mxu0 %v342
  %386 = vmatprep.subr.mxu0 %v341
  %387 = vmatpush1.msra.mxu0 %v340
  %388 = vmatprep.subr.mxu0 0.0
  %389 = vmatpush2.msra.mxu0 0.0
  %390 = vmatprep.subr.mxu0 0.0
  %391 = vmatpush2.msra.mxu0 0.0
  %392 = vmatprep.subr.mxu0 0.0
  %393 = vmatpush2.msra.mxu0 0.0
  %394 = vmatprep.subr.mxu0 0.0
  %395 = vmatpush2.msra.mxu0 0.0
  %396 = vmatprep.subr.mxu0 0.0
  %397 = vmatpush2.msra.mxu0 0.0
  %398 = vmatprep.subr.mxu0 0.0
  %399 = vmatpush2.msra.mxu0 0.0
  %400 = vmatprep.subr.mxu0 0.0
  %401 = vmatpush2.msra.mxu0 0.0
  %402 = vmatprep.subr.mxu0 0.0
  %403 = vmatpush2.msra.mxu0 0.0
  %404 = vmatprep.subr.mxu0 0.0
  %405 = vmatpush2.msra.mxu0 0.0
  %406 = vmatprep.subr.mxu0 0.0
  %407 = vmatpush2.msra.mxu0 0.0
  %408 = vmatprep.subr.mxu0 0.0
  %409 = vmatpush2.msra.mxu0 0.0
  %410 = vmatprep.subr.mxu0 0.0
  %411 = vmatpush2.msra.mxu0 0.0
  %412 = vmatprep.subr.mxu0 0.0
  %413 = vmatpush2.msra.mxu0 0.0
  %414 = vmatprep.subr.mxu0 0.0
  %415 = vmatpush2.msra.mxu0 0.0
  %416 = vmatprep.subr.mxu0 0.0
  %417 = vmatpush2.msra.mxu0 0.0
  %418 = vmatprep.subr.mxu0 0.0
  %419 = vmatpush2.msra.mxu0 0.0
  %420 = vmatprep.mubr.f32.mxu0 0.0
  %421 = vmatmul.mubr.f32.gmra.mxu0 %v140
  %v422 = vpop.f32.mrf.mxu0
  %v423 = vadd.f32 0.0, %v422
  %v424 = vpop.f32.mrf.mxu0
  %v425 = vadd.f32 0.0, %v424
  %426 = vdwg.mxu0
  %v427 = vmul.f32 %v423, %v224
  %v428 = vmul.f32 %v425, %v228
  %v429 = vadd.f32 %v427, %v428
  %430 = vadd.xlane.f32.xlu0 %v429
  %v431 = vpop.xlane.xlu0 %430
  %v432 = vadd.f32 %v236, %v431
  %v433 = vmul.f32 %v427, %v427
  %v434 = vmul.f32 %v428, %v428
  %v435 = vadd.f32 %v433, %v434
  %436 = vadd.xlane.f32.xlu0 %v435
  %v437 = vpop.xlane.xlu0 %436
  %v438 = vadd.f32 %v242, %v437
  %s439 = scalar_lea.vmem [#allocation2], 16
  %440 = vst [vmem:[%s439] sm:$0xff] %v423
  %441 = vst [vmem:[%s439 + $0x8] sm:$0xff] %v425
  %v442 = vmul.f32 %v432, 0.0025510204
  %v443 = vmul.f32 %v438, 0.0025510204
  %v444 = vmul.f32 %v442, %v442
  %v445 = vsub.f32 %v443, %v444
  %v446 = vadd.f32 %v445, 1e-05
  %v447 = vrsqrt.pop %v446
  %v448 = vld [vmem:[#allocation2] sm:$0xff]
  %v449 = vld [vmem:[#allocation2 + $0x8] sm:$0xff]
  %v450 = vsub.f32 %v448, %v442
  %v451 = vsub.f32 %v449, %v442
  %v452 = vmul.f32 %v450, %v447
  %v453 = vmul.f32 %v451, %v447
  %v454 = vmax.f32 %v452, 0.0
  %v455 = vmax.f32 %v453, 0.0
  %456 = vst [vmem:[#allocation4] sm:$0xff] %v454
  %457 = vst [vmem:[#allocation4 + $0x8] sm:$0xff] %v455
  %458 = vrot.lane.b32.xlu0 %v454, 127
  %v459 = vpop.permute.xlu0 %458
  %460 = vrot.lane.b32.xlu0 %v455, 127
  %v461 = vpop.permute.xlu0 %460
  %v462 = vsel %vm36, %v459, %v461
  %v463 = vsel %vm36, %v461, %v459
  %464 = vst [vmem:[#allocation4 + $0x10] sm:$0xff] %v462
  %465 = vst [vmem:[#allocation4 + $0x18] sm:$0xff] %v463
  %466 = vrot.lane.b32.xlu0 %v454, 126
  %v467 = vpop.permute.xlu0 %466
  %468 = vrot.lane.b32.xlu0 %v455, 126
  %v469 = vpop.permute.xlu0 %468
  %v470 = vsel %vm51, %v467, %v469
  %v471 = vsel %vm51, %v469, %v467
  %472 = vst [vmem:[#allocation4 + $0x20] sm:$0xff] %v470
  %473 = vst [vmem:[#allocation4 + $0x28] sm:$0xff] %v471
  %474 = vrot.lane.b32.xlu0 %v454, 112
  %v475 = vpop.permute.xlu0 %474
  %476 = vrot.lane.b32.xlu0 %v455, 112
  %v477 = vpop.permute.xlu0 %476
  %v478 = vsel %vm60, %v475, %v477
  %v479 = vsel %vm60, %v477, %v475
  %480 = vst [vmem:[#allocation4 + $0x30] sm:$0xff] %v478
  %481 = vst [vmem:[#allocation4 + $0x38] sm:$0xff] %v479
  %482 = vrot.lane.b32.xlu0 %v454, 111
  %v483 = vpop.permute.xlu0 %482
  %484 = vrot.lane.b32.xlu0 %v455, 111
  %v485 = vpop.permute.xlu0 %484
  %v486 = vsel %vm75, %v483, %v485
  %v487 = vsel %vm75, %v485, %v483
  %488 = vst [vmem:[#allocation4 + $0x40] sm:$0xff] %v486
  %489 = vst [vmem:[#allocation4 + $0x48] sm:$0xff] %v487
  %490 = vrot.lane.b32.xlu0 %v454, 110
  %v491 = vpop.permute.xlu0 %490
  %492 = vrot.lane.b32.xlu0 %v455, 110
  %v493 = vpop.permute.xlu0 %492
  %v494 = vsel %vm84, %v491, %v493
  %v495 = vsel %vm84, %v493, %v491
  %496 = vst [vmem:[#allocation4 + $0x50] sm:$0xff] %v494
  %497 = vst [vmem:[#allocation4 + $0x58] sm:$0xff] %v495
  %498 = vrot.lane.b32.xlu0 %v454, 96
  %v499 = vpop.permute.xlu0 %498
  %500 = vrot.lane.b32.xlu0 %v455, 96
  %v501 = vpop.permute.xlu0 %500
  %v502 = vsel %vm99, %v499, %v501
  %v503 = vsel %vm99, %v501, %v499
  %504 = vst [vmem:[#allocation4 + $0x60] sm:$0xff] %v502
  %505 = vst [vmem:[#allocation4 + $0x68] sm:$0xff] %v503
  %506 = vrot.lane.b32.xlu0 %v454, 95
  %v507 = vpop.permute.xlu0 %506
  %508 = vrot.lane.b32.xlu0 %v455, 95
  %v509 = vpop.permute.xlu0 %508
  %v510 = vsel %vm108, %v507, %v509
  %v511 = vsel %vm108, %v509, %v507
  %512 = vst [vmem:[#allocation4 + $0x70] sm:$0xff] %v510
  %513 = vst [vmem:[#allocation4 + $0x78] sm:$0xff] %v511
  %514 = vrot.lane.b32.xlu0 %v454, 94
  %v515 = vpop.permute.xlu0 %514
  %516 = vrot.lane.b32.xlu0 %v455, 94
  %v517 = vpop.permute.xlu0 %516
  %v518 = vsel %vm123, %v515, %v517
  %v519 = vsel %vm123, %v517, %v515
  %520 = vst [vmem:[#allocation4 + $0x80] sm:$0xff] %v518
  %521 = vst [vmem:[#allocation4 + $0x88] sm:$0xff] %v519
  %v522 = vld [vmem:[#allocation4] sm:$0xff]
  %v523 = vld [vmem:[#allocation4 + $0x8] sm:$0xff]
  %v524 = vld [vmem:[#allocation4 + $0x10] sm:$0xff]
  %v525 = vld [vmem:[#allocation4 + $0x18] sm:$0xff]
  %v526 = vld [vmem:[#allocation4 + $0x20] sm:$0xff]
  %v527 = vld [vmem:[#allocation4 + $0x28] sm:$0xff]
  %v528 = vld [vmem:[#allocation4 + $0x30] sm:$0xff]
  %v529 = vld [vmem:[#allocation4 + $0x38] sm:$0xff]
  %v530 = vld [vmem:[#allocation4 + $0x40] sm:$0xff]
  %v531 = vld [vmem:[#allocation4 + $0x48] sm:$0xff]
  %v532 = vld [vmem:[#allocation4 + $0x50] sm:$0xff]
  %v533 = vld [vmem:[#allocation4 + $0x58] sm:$0xff]
  %v534 = vld [vmem:[#allocation4 + $0x60] sm:$0xff]
  %v535 = vld [vmem:[#allocation4 + $0x68] sm:$0xff]
  %v536 = vld [vmem:[#allocation4 + $0x70] sm:$0xff]
  %v537 = vld [vmem:[#allocation4 + $0x78] sm:$0xff]
  %v538 = vld [vmem:[#allocation4 + $0x80] sm:$0xff]
  %v539 = vld [vmem:[#allocation4 + $0x88] sm:$0xff]
  %vm540 = vcmask 588800
  %v542 = vsel %vm540, %v23, 0
  %544 = vmatprep.subr.mxu0 0.0
  %545 = vmatpush1.msra.mxu0 0.0
  %546 = vmatprep.subr.mxu0 0.0
  %547 = vmatpush1.msra.mxu0 0.0
  %548 = vmatprep.subr.mxu0 0.0
  %549 = vmatpush1.msra.mxu0 0.0
  %550 = vmatprep.subr.mxu0 0.0
  %551 = vmatpush1.msra.mxu0 0.0
  %552 = vmatprep.subr.mxu0 0.0
  %553 = vmatpush1.msra.mxu0 0.0
  %554 = vmatprep.subr.mxu0 0.0
  %555 = vmatpush1.msra.mxu0 0.0
  %556 = vmatprep.subr.mxu0 0.0
  %557 = vmatpush1.msra.mxu0 0.0
  %558 = vmatprep.subr.mxu0 %v539
  %559 = vmatpush1.msra.mxu0 %v538
  %560 = vmatprep.subr.mxu0 %v537
  %561 = vmatpush1.msra.mxu0 %v536
  %562 = vmatprep.subr.mxu0 %v535
  %563 = vmatpush1.msra.mxu0 %v534
  %564 = vmatprep.subr.mxu0 %v533
  %565 = vmatpush1.msra.mxu0 %v532
  %566 = vmatprep.subr.mxu0 %v531
  %567 = vmatpush1.msra.mxu0 %v530
  %568 = vmatprep.subr.mxu0 %v529
  %569 = vmatpush1.msra.mxu0 %v528
  %570 = vmatprep.subr.mxu0 %v527
  %571 = vmatpush1.msra.mxu0 %v526
  %572 = vmatprep.subr.mxu0 %v525
  %573 = vmatpush1.msra.mxu0 %v524
  %574 = vmatprep.subr.mxu0 %v523
  %575 = vmatpush1.msra.mxu0 %v522
  %576 = vmatprep.subr.mxu0 0.0
  %577 = vmatpush2.msra.mxu0 0.0
  %578 = vmatprep.subr.mxu0 0.0
  %579 = vmatpush2.msra.mxu0 0.0
  %580 = vmatprep.subr.mxu0 0.0
  %581 = vmatpush2.msra.mxu0 0.0
  %582 = vmatprep.subr.mxu0 0.0
  %583 = vmatpush2.msra.mxu0 0.0
  %584 = vmatprep.subr.mxu0 0.0
  %585 = vmatpush2.msra.mxu0 0.0
  %586 = vmatprep.subr.mxu0 0.0
  %587 = vmatpush2.msra.mxu0 0.0
  %588 = vmatprep.subr.mxu0 0.0
  %589 = vmatpush2.msra.mxu0 0.0
  %590 = vmatprep.subr.mxu0 0.0
  %591 = vmatpush2.msra.mxu0 0.0
  %592 = vmatprep.subr.mxu0 0.0
  %593 = vmatpush2.msra.mxu0 0.0
  %594 = vmatprep.subr.mxu0 0.0
  %595 = vmatpush2.msra.mxu0 0.0
  %596 = vmatprep.subr.mxu0 0.0
  %597 = vmatpush2.msra.mxu0 0.0
  %598 = vmatprep.subr.mxu0 0.0
  %599 = vmatpush2.msra.mxu0 0.0
  %600 = vmatprep.subr.mxu0 0.0
  %601 = vmatpush2.msra.mxu0 0.0
  %602 = vmatprep.subr.mxu0 0.0
  %603 = vmatpush2.msra.mxu0 0.0
  %604 = vmatprep.subr.mxu0 0.0
  %605 = vmatpush2.msra.mxu0 0.0
  %606 = vmatprep.subr.mxu0 0.0
  %607 = vmatpush2.msra.mxu0 0.0
  %608 = vmatprep.mubr.f32.mxu0 0.0
  %609 = vmatmul.mubr.f32.gmra.mxu0 %v542
  %v610 = vpop.f32.mrf.mxu0
  %v611 = vadd.f32 0.0, %v610
  %v612 = vpop.f32.mrf.mxu0
  %v613 = vadd.f32 0.0, %v612
  %614 = vdwg.mxu0
  %v616 = vlaneseq
  %v617 = vshrl.u32 %v616, 7
  %v618 = vsub.s32 0, %v617
  %v619 = vrot.slane %v21, %v618
  %v620 = vlaneseq
  %v621 = vshrl.u32 %v620, 7
  %v622 = vsub.s32 1, %v621
  %v623 = vrot.slane %v21, %v622
  %v626 = vmul.f32 %v611, %v619
  %v627 = vmul.f32 %v613, %v623
  %v628 = vadd.f32 %v626, %v627
  %629 = vadd.xlane.f32.xlu0 %v628
  %v630 = vpop.xlane.xlu0 %629
  %v631 = vadd.f32 %v630, 0.0
  %v632 = vmul.f32 %v626, %v626
  %v633 = vmul.f32 %v627, %v627
  %v634 = vadd.f32 %v632, %v633
  %635 = vadd.xlane.f32.xlu0 %v634
  %v636 = vpop.xlane.xlu0 %635
  %v637 = vadd.f32 %v636, 0.0
  %638 = vst [vmem:[%s5] sm:$0xff] %v611
  %639 = vst [vmem:[%s5 + $0x8] sm:$0xff] %v613
  %v640 = vld [vmem:[%s439] sm:$0xff]
  %v641 = vld [vmem:[%s439 + $0x8] sm:$0xff]
  %v642 = vsub.f32 %v640, %v442
  %v643 = vsub.f32 %v641, %v442
  %v644 = vmul.f32 %v642, %v447
  %v645 = vmul.f32 %v643, %v447
  %v646 = vmax.f32 %v644, 0.0
  %v647 = vmax.f32 %v645, 0.0
  %648 = vst [vmem:[#allocation4] sm:$0xff] %v646
  %649 = vst [vmem:[#allocation4 + $0x8] sm:$0xff] %v647
  %650 = vrot.lane.b32.xlu0 %v646, 127
  %v651 = vpop.permute.xlu0 %650
  %652 = vrot.lane.b32.xlu0 %v647, 127
  %v653 = vpop.permute.xlu0 %652
  %v654 = vsel %vm36, %v651, %v653
  %v655 = vsel %vm36, %v653, %v651
  %656 = vst [vmem:[#allocation4 + $0x10] sm:$0xff] %v654
  %657 = vst [vmem:[#allocation4 + $0x18] sm:$0xff] %v655
  %658 = vrot.lane.b32.xlu0 %v646, 126
  %v659 = vpop.permute.xlu0 %658
  %660 = vrot.lane.b32.xlu0 %v647, 126
  %v661 = vpop.permute.xlu0 %660
  %v662 = vsel %vm51, %v659, %v661
  %v663 = vsel %vm51, %v661, %v659
  %664 = vst [vmem:[#allocation4 + $0x20] sm:$0xff] %v662
  %665 = vst [vmem:[#allocation4 + $0x28] sm:$0xff] %v663
  %666 = vrot.lane.b32.xlu0 %v646, 112
  %v667 = vpop.permute.xlu0 %666
  %668 = vrot.lane.b32.xlu0 %v647, 112
  %v669 = vpop.permute.xlu0 %668
  %v670 = vsel %vm60, %v667, %v669
  %v671 = vsel %vm60, %v669, %v667
  %672 = vst [vmem:[#allocation4 + $0x30] sm:$0xff] %v670
  %673 = vst [vmem:[#allocation4 + $0x38] sm:$0xff] %v671
  %674 = vrot.lane.b32.xlu0 %v646, 111
  %v675 = vpop.permute.xlu0 %674
  %676 = vrot.lane.b32.xlu0 %v647, 111
  %v677 = vpop.permute.xlu0 %676
  %v678 = vsel %vm75, %v675, %v677
  %v679 = vsel %vm75, %v677, %v675
  %680 = vst [vmem:[#allocation4 + $0x40] sm:$0xff] %v678
  %681 = vst [vmem:[#allocation4 + $0x48] sm:$0xff] %v679
  %682 = vrot.lane.b32.xlu0 %v646, 110
  %v683 = vpop.permute.xlu0 %682
  %684 = vrot.lane.b32.xlu0 %v647, 110
  %v685 = vpop.permute.xlu0 %684
  %v686 = vsel %vm84, %v683, %v685
  %v687 = vsel %vm84, %v685, %v683
  %688 = vst [vmem:[#allocation4 + $0x50] sm:$0xff] %v686
  %689 = vst [vmem:[#allocation4 + $0x58] sm:$0xff] %v687
  %690 = vrot.lane.b32.xlu0 %v646, 96
  %v691 = vpop.permute.xlu0 %690
  %692 = vrot.lane.b32.xlu0 %v647, 96
  %v693 = vpop.permute.xlu0 %692
  %v694 = vsel %vm99, %v691, %v693
  %v695 = vsel %vm99, %v693, %v691
  %696 = vst [vmem:[#allocation4 + $0x60] sm:$0xff] %v694
  %697 = vst [vmem:[#allocation4 + $0x68] sm:$0xff] %v695
  %698 = vrot.lane.b32.xlu0 %v646, 95
  %v699 = vpop.permute.xlu0 %698
  %700 = vrot.lane.b32.xlu0 %v647, 95
  %v701 = vpop.permute.xlu0 %700
  %v702 = vsel %vm108, %v699, %v701
  %v703 = vsel %vm108, %v701, %v699
  %704 = vst [vmem:[#allocation4 + $0x70] sm:$0xff] %v702
  %705 = vst [vmem:[#allocation4 + $0x78] sm:$0xff] %v703
  %706 = vrot.lane.b32.xlu0 %v646, 94
  %v707 = vpop.permute.xlu0 %706
  %708 = vrot.lane.b32.xlu0 %v647, 94
  %v709 = vpop.permute.xlu0 %708
  %v710 = vsel %vm123, %v707, %v709
  %v711 = vsel %vm123, %v709, %v707
  %712 = vst [vmem:[#allocation4 + $0x80] sm:$0xff] %v710
  %713 = vst [vmem:[#allocation4 + $0x88] sm:$0xff] %v711
  %v714 = vld [vmem:[#allocation4] sm:$0xff]
  %v715 = vld [vmem:[#allocation4 + $0x8] sm:$0xff]
  %v716 = vld [vmem:[#allocation4 + $0x10] sm:$0xff]
  %v717 = vld [vmem:[#allocation4 + $0x18] sm:$0xff]
  %v718 = vld [vmem:[#allocation4 + $0x20] sm:$0xff]
  %v719 = vld [vmem:[#allocation4 + $0x28] sm:$0xff]
  %v720 = vld [vmem:[#allocation4 + $0x30] sm:$0xff]
  %v721 = vld [vmem:[#allocation4 + $0x38] sm:$0xff]
  %v722 = vld [vmem:[#allocation4 + $0x40] sm:$0xff]
  %v723 = vld [vmem:[#allocation4 + $0x48] sm:$0xff]
  %v724 = vld [vmem:[#allocation4 + $0x50] sm:$0xff]
  %v725 = vld [vmem:[#allocation4 + $0x58] sm:$0xff]
  %v726 = vld [vmem:[#allocation4 + $0x60] sm:$0xff]
  %v727 = vld [vmem:[#allocation4 + $0x68] sm:$0xff]
  %v728 = vld [vmem:[#allocation4 + $0x70] sm:$0xff]
  %v729 = vld [vmem:[#allocation4 + $0x78] sm:$0xff]
  %v730 = vld [vmem:[#allocation4 + $0x80] sm:$0xff]
  %v731 = vld [vmem:[#allocation4 + $0x88] sm:$0xff]
  %732 = vmatprep.subr.mxu0 0.0
  %733 = vmatpush1.msra.mxu0 0.0
  %734 = vmatprep.subr.mxu0 0.0
  %735 = vmatpush1.msra.mxu0 0.0
  %736 = vmatprep.subr.mxu0 0.0
  %737 = vmatpush1.msra.mxu0 0.0
  %738 = vmatprep.subr.mxu0 0.0
  %739 = vmatpush1.msra.mxu0 0.0
  %740 = vmatprep.subr.mxu0 0.0
  %741 = vmatpush1.msra.mxu0 0.0
  %742 = vmatprep.subr.mxu0 0.0
  %743 = vmatpush1.msra.mxu0 0.0
  %744 = vmatprep.subr.mxu0 0.0
  %745 = vmatpush1.msra.mxu0 0.0
  %746 = vmatprep.subr.mxu0 %v731
  %747 = vmatpush1.msra.mxu0 %v730
  %748 = vmatprep.subr.mxu0 %v729
  %749 = vmatpush1.msra.mxu0 %v728
  %750 = vmatprep.subr.mxu0 %v727
  %751 = vmatpush1.msra.mxu0 %v726
  %752 = vmatprep.subr.mxu0 %v725
  %753 = vmatpush1.msra.mxu0 %v724
  %754 = vmatprep.subr.mxu0 %v723
  %755 = vmatpush1.msra.mxu0 %v722
  %756 = vmatprep.subr.mxu0 %v721
  %757 = vmatpush1.msra.mxu0 %v720
  %758 = vmatprep.subr.mxu0 %v719
  %759 = vmatpush1.msra.mxu0 %v718
  %760 = vmatprep.subr.mxu0 %v717
  %761 = vmatpush1.msra.mxu0 %v716
  %762 = vmatprep.subr.mxu0 %v715
  %763 = vmatpush1.msra.mxu0 %v714
  %764 = vmatprep.subr.mxu0 0.0
  %765 = vmatpush2.msra.mxu0 0.0
  %766 = vmatprep.subr.mxu0 0.0
  %767 = vmatpush2.msra.mxu0 0.0
  %768 = vmatprep.subr.mxu0 0.0
  %769 = vmatpush2.msra.mxu0 0.0
  %770 = vmatprep.subr.mxu0 0.0
  %771 = vmatpush2.msra.mxu0 0.0
  %772 = vmatprep.subr.mxu0 0.0
  %773 = vmatpush2.msra.mxu0 0.0
  %774 = vmatprep.subr.mxu0 0.0
  %775 = vmatpush2.msra.mxu0 0.0
  %776 = vmatprep.subr.mxu0 0.0
  %777 = vmatpush2.msra.mxu0 0.0
  %778 = vmatprep.subr.mxu0 0.0
  %779 = vmatpush2.msra.mxu0 0.0
  %780 = vmatprep.subr.mxu0 0.0
  %781 = vmatpush2.msra.mxu0 0.0
  %782 = vmatprep.subr.mxu0 0.0
  %783 = vmatpush2.msra.mxu0 0.0
  %784 = vmatprep.subr.mxu0 0.0
  %785 = vmatpush2.msra.mxu0 0.0
  %786 = vmatprep.subr.mxu0 0.0
  %787 = vmatpush2.msra.mxu0 0.0
  %788 = vmatprep.subr.mxu0 0.0
  %789 = vmatpush2.msra.mxu0 0.0
  %790 = vmatprep.subr.mxu0 0.0
  %791 = vmatpush2.msra.mxu0 0.0
  %792 = vmatprep.subr.mxu0 0.0
  %793 = vmatpush2.msra.mxu0 0.0
  %794 = vmatprep.subr.mxu0 0.0
  %795 = vmatpush2.msra.mxu0 0.0
  %796 = vmatprep.mubr.f32.mxu0 0.0
  %797 = vmatmul.mubr.f32.gmra.mxu0 %v542
  %v798 = vpop.f32.mrf.mxu0
  %v799 = vadd.f32 0.0, %v798
  %v800 = vpop.f32.mrf.mxu0
  %v801 = vadd.f32 0.0, %v800
  %802 = vdwg.mxu0
  %v803 = vmul.f32 %v799, %v619
  %v804 = vmul.f32 %v801, %v623
  %v805 = vadd.f32 %v803, %v804
  %806 = vadd.xlane.f32.xlu0 %v805
  %v807 = vpop.xlane.xlu0 %806
  %v808 = vadd.f32 %v631, %v807
  %v809 = vmul.f32 %v803, %v803
  %v810 = vmul.f32 %v804, %v804
  %v811 = vadd.f32 %v809, %v810
  %812 = vadd.xlane.f32.xlu0 %v811
  %v813 = vpop.xlane.xlu0 %812
  %v814 = vadd.f32 %v637, %v813
  %s815 = scalar_lea.vmem %s5, 16
  %816 = vst [vmem:[%s815] sm:$0xff] %v799
  %817 = vst [vmem:[%s815 + $0x8] sm:$0xff] %v801
  %v818 = vmul.f32 %v808, 0.0034722222
  %v819 = vmul.f32 %v814, 0.0034722222
  %v820 = vmul.f32 %v818, %v818
  %v821 = vsub.f32 %v819, %v820
  %v822 = vadd.f32 %v821, 1e-05
  %v823 = vrsqrt.pop %v822
  %v824 = vld [vmem:[%s5] sm:$0xff]
  %v825 = vld [vmem:[%s5 + $0x8] sm:$0xff]
  %v826 = vsub.f32 %v824, %v818
  %v827 = vsub.f32 %v825, %v818
  %v828 = vmul.f32 %v826, %v823
  %v829 = vmul.f32 %v827, %v823
  %v830 = vmax.f32 %v828, 0.0
  %v831 = vmax.f32 %v829, 0.0
  %v832 = vmul.f32 %v830, %v619
  %v833 = vmul.f32 %v831, %v623
  %834 = vst [vmem:[%s5] sm:$0xff] %v832
  %835 = vst [vmem:[%s5 + $0x8] sm:$0xff] %v833
  %v836 = vld [vmem:[%s815] sm:$0xff]
  %v837 = vld [vmem:[%s815 + $0x8] sm:$0xff]
  %v838 = vsub.f32 %v836, %v818
  %v839 = vsub.f32 %v837, %v818
  %v840 = vmul.f32 %v838, %v823
  %v841 = vmul.f32 %v839, %v823
  %v842 = vmax.f32 %v840, 0.0
  %v843 = vmax.f32 %v841, 0.0
  %v844 = vmul.f32 %v842, %v619
  %v845 = vmul.f32 %v843, %v623
  %846 = vst [vmem:[%s815] sm:$0xff] %v844
  %847 = vst [vmem:[%s815 + $0x8] sm:$0xff] %v845
  // Predicated region
  $region22: #{block_forward.1} parent=0 // pred_check
    _
  $region23: #{block_forward.1} parent=0 // pred_check_branch
    %849 = sbr.rel (0) target = $region25
  $region24: #{block_forward.1} parent=0 // pred_region
    _
  $region25: #{block_forward.1} parent=0 // pred_fallthru
    _
  // Predicated region
  $region26: #{block_forward.1} parent=0 // pred_check
    _
  $region27: #{block_forward.1} parent=0 // pred_check_branch
    %851 = sbr.rel (0) target = $region29
  $region28: #{block_forward.1} parent=0 // pred_region
    _
  $region29: #{block_forward.1} parent=0 // pred_fallthru
    _

</llo_original>
